<compile_context>
chip_gen: v5e
topology: v5e:2x2
jax: 0.10.0
libtpu: 0.0.40
codegen_flags: <defaults>
</compile_context>

<pallas_src>
import jax
import jax.numpy as jnp
from jax.experimental import pallas as pl
from jax.experimental.pallas import tpu as pltpu


def lstm_kernel(x_ref,      # (T, Bp, I)   time-major padded input
                wih_ref,    # (I, 4Hp)     W_ih^T, gate-block padded
                whh_ref,    # (Hp, 4Hp)    W_hh^T, row + gate-block padded
                b_ref,      # (1, 4Hp)     b_ih + b_hh, gate-block padded
                wlin_ref,   # (Hp, 1)      linear weight^T, row padded
                blin_ref,   # (1, 1)       linear bias
                out_ref,    # (Bp, 1)
                gx_ref,     # scratch (T, Bp, 4Hp) precomputed input gates
                h_ref,      # scratch (Bp, Hp)
                c_ref):     # scratch (Bp, Hp)
    T, Bp, I = x_ref.shape
    Hp = h_ref.shape[1]
    G = 4 * Hp

    # ---- Hoisted input projection + bias (done once, outside the recurrence) ----
    if I == 1:
        # (T, Bp, 1) * (1, 1, 4Hp) broadcast multiply == x @ W_ih^T for I == 1.
        gx = x_ref[...] * wih_ref[...].reshape(1, 1, G)
    else:
        gx = jnp.dot(x_ref[...].reshape(T * Bp, I), wih_ref[...],
                     preferred_element_type=jnp.float32).reshape(T, Bp, G)
    gx_ref[...] = gx + b_ref[...].reshape(1, 1, G)   # single bias broadcast

    h_ref[...] = jnp.zeros_like(h_ref)
    c_ref[...] = jnp.zeros_like(c_ref)

    def step(t, carry):
        h = h_ref[...]                                   # (Bp, Hp)
        c = c_ref[...]                                   # (Bp, Hp)
        gates = gx_ref[t] + jnp.dot(h, whh_ref[...],
                                    preferred_element_type=jnp.float32)  # (Bp, 4Hp)
        # 128-lane-aligned gate slices (free vreg selects).
        i_g = jax.nn.sigmoid(gates[:, 0 * Hp:1 * Hp])
        f_g = jax.nn.sigmoid(gates[:, 1 * Hp:2 * Hp])
        g_g = jnp.tanh(gates[:, 2 * Hp:3 * Hp])
        o_g = jax.nn.sigmoid(gates[:, 3 * Hp:4 * Hp])
        c_new = f_g * c + i_g * g_g
        c_ref[...] = c_new
        h_ref[...] = o_g * jnp.tanh(c_new)
        return carry

    # T is small and static: fully unroll so the LLO scheduler sees across steps.
    jax.lax.fori_loop(0, T, step, 0, unroll=True)

    # Final projection on the last hidden state (== out[:, -1, :] @ W^T + b).
    out_ref[...] = (jnp.dot(h_ref[...], wlin_ref[...],
                            preferred_element_type=jnp.float32)
                    + blin_ref[...])


def simple_lstm_forward(x, packed):
    """x: (B, T, I) float32. Returns (B, 1) float32."""
    B, T, I = x.shape
    Hp = packed["whh_t"].shape[0]
    Bp = ((B + 7) // 8) * 8          # pad batch to the f32 sublane tile

    x_tm = jnp.transpose(x, (1, 0, 2))               # (T, B, I) time-major
    if Bp != B:
        x_tm = jnp.pad(x_tm, ((0, 0), (0, Bp - B), (0, 0)))

    vmem = pltpu.MemorySpace.VMEM
    out = pl.pallas_call(
        lstm_kernel,
        out_shape=jax.ShapeDtypeStruct((Bp, 1), jnp.float32),
        in_specs=[pl.BlockSpec(memory_space=vmem)] * 6,
        out_specs=pl.BlockSpec(memory_space=vmem),
        scratch_shapes=[pltpu.VMEM((T, Bp, 4 * Hp), jnp.float32),
                        pltpu.VMEM((Bp, Hp), jnp.float32),
                        pltpu.VMEM((Bp, Hp), jnp.float32)],
        # TODO(synk): if B ever grows, add grid=(Bp//Btile,) with
        # dimension_semantics=("parallel",) to use both v7x TensorCores.
    )(x_tm,
      packed["wih_t"], packed["whh_t"], packed["bias"],
      packed["wlin_t"], packed["blin"])
    return out[:B]


def init_raw_params(key, input_size=1, hidden_size=50):
    """PyTorch-style raw weights, U(-1/sqrt(H), 1/sqrt(H))."""
    H, I = hidden_size, input_size
    k = 1.0 / jnp.sqrt(jnp.float32(H))
    ks = jax.random.split(key, 6)
    u = lambda kk, shape: jax.random.uniform(kk, shape, jnp.float32, -k, k)
    return {
        "w_ih": u(ks[0], (4 * H, I)),    # weight_ih_l0
        "w_hh": u(ks[1], (4 * H, H)),    # weight_hh_l0
        "b_ih": u(ks[2], (4 * H,)),
        "b_hh": u(ks[3], (4 * H,)),
        "w_lin": u(ks[4], (1, H)),       # Linear(hidden, 1) weight
        "b_lin": u(ks[5], (1,)),
    }


def pack_params(raw, hidden_size=50, hpad=128):
    """Transpose + zero-pad so each gate sits in its own 128-lane block."""
    H, Hp = hidden_size, hpad

    def pad_gate_cols_t(w):              # w: (4H, K) -> (K, 4*Hp)
        K = w.shape[1]
        w4 = w.reshape(4, H, K)
        w4 = jnp.pad(w4, ((0, 0), (0, Hp - H), (0, 0)))        # (4, Hp, K)
        return jnp.transpose(w4, (2, 0, 1)).reshape(K, 4 * Hp)

    wih_t = pad_gate_cols_t(raw["w_ih"])                        # (I, 4Hp)
    whh_t = jnp.pad(pad_gate_cols_t(raw["w_hh"]),
                    ((0, Hp - H), (0, 0)))                      # (Hp, 4Hp)
    bias = jnp.pad((raw["b_ih"] + raw["b_hh"]).reshape(4, H),
                   ((0, 0), (0, Hp - H))).reshape(1, 4 * Hp)    # (1, 4Hp)
    wlin_t = jnp.pad(jnp.transpose(raw["w_lin"]),
                     ((0, Hp - H), (0, 0)))                     # (Hp, 1)
    blin = raw["b_lin"].reshape(1, 1)                           # (1, 1)
    return {"wih_t": wih_t, "whh_t": whh_t, "bias": bias,
            "wlin_t": wlin_t, "blin": blin}


def reference_forward(x, raw):
    """Pure-JAX reference on the unpadded weights (sanity check)."""
    B, T, I = x.shape
    H = raw["w_hh"].shape[1]
    wih_t = raw["w_ih"].T
    whh_t = raw["w_hh"].T
    b = (raw["b_ih"] + raw["b_hh"]).reshape(1, 4 * H)
    h = jnp.zeros((B, H), jnp.float32)
    c = jnp.zeros((B, H), jnp.float32)
    for t in range(T):
        gates = x[:, t, :] @ wih_t + h @ whh_t + b
        i_g = jax.nn.sigmoid(gates[:, 0 * H:1 * H])
        f_g = jax.nn.sigmoid(gates[:, 1 * H:2 * H])
        g_g = jnp.tanh(gates[:, 2 * H:3 * H])
        o_g = jax.nn.sigmoid(gates[:, 3 * H:4 * H])
        c = f_g * c + i_g * g_g
        h = o_g * jnp.tanh(c)
    return h @ raw["w_lin"].T + raw["b_lin"].reshape(1, 1)


if __name__ == "__main__":
    key = jax.random.PRNGKey(0)
    k_x, k_p = jax.random.split(key)

    B, T, I, H = 2, 8, 1, 50
    x = jax.random.normal(k_x, (B, T, I), jnp.float32)

    raw = init_raw_params(k_p, input_size=I, hidden_size=H)
    packed = pack_params(raw, hidden_size=H, hpad=128)

    out = simple_lstm_forward(x, packed)
    out = jax.block_until_ready(out)

    ref = reference_forward(x, raw)
    assert out.shape == (B, 1)
    assert jnp.allclose(out, ref, atol=1e-4, rtol=1e-4), (out, ref)

    print("KERNEL_OK")
</pallas_src>

<mosaic_0001>
module attributes {stable_mosaic.version = 11 : i64} {
  func.func @lstm_kernel(%arg0: memref<8x8x1xf32, #tpu.memory_space<vmem>>, %arg1: memref<1x512xf32, #tpu.memory_space<vmem>>, %arg2: memref<128x512xf32, #tpu.memory_space<vmem>>, %arg3: memref<1x512xf32, #tpu.memory_space<vmem>>, %arg4: memref<128x1xf32, #tpu.memory_space<vmem>>, %arg5: memref<1x1xf32, #tpu.memory_space<vmem>>, %arg6: memref<8x1xf32, #tpu.memory_space<vmem>>, %arg7: memref<8x8x512xf32, #tpu.memory_space<vmem>>, %arg8: memref<8x128xf32, #tpu.memory_space<vmem>>, %arg9: memref<8x128xf32, #tpu.memory_space<vmem>>) attributes {dimension_semantics = [], scalar_prefetch = 0 : i64, scratch_operands = 3 : i64, tpu.core_type = #tpu.core_type<tc>} {
    %c0 = arith.constant 0 : index
    %c0_0 = arith.constant 0 : index
    %c0_1 = arith.constant 0 : index
    %0 = vector.load %arg0[%c0, %c0_0, %c0_1] : memref<8x8x1xf32, #tpu.memory_space<vmem>>, vector<8x8x1xf32>
    %c0_2 = arith.constant 0 : index
    %c0_3 = arith.constant 0 : index
    %1 = vector.load %arg1[%c0_2, %c0_3] : memref<1x512xf32, #tpu.memory_space<vmem>>, vector<1x512xf32>
    %2 = vector.shape_cast %1 : vector<1x512xf32> to vector<1x1x512xf32>
    %3 = vector.broadcast %0 : vector<8x8x1xf32> to vector<8x8x512xf32>
    %4 = vector.broadcast %2 : vector<1x1x512xf32> to vector<8x8x512xf32>
    %5 = arith.mulf %3, %4 : vector<8x8x512xf32>
    %c0_4 = arith.constant 0 : index
    %c0_5 = arith.constant 0 : index
    %6 = vector.load %arg3[%c0_4, %c0_5] : memref<1x512xf32, #tpu.memory_space<vmem>>, vector<1x512xf32>
    %7 = vector.shape_cast %6 : vector<1x512xf32> to vector<1x1x512xf32>
    %8 = vector.broadcast %7 : vector<1x1x512xf32> to vector<8x8x512xf32>
    %9 = arith.addf %5, %8 : vector<8x8x512xf32>
    %c0_6 = arith.constant 0 : index
    %c0_7 = arith.constant 0 : index
    %c0_8 = arith.constant 0 : index
    %10 = vector.load %arg7[%c0_6, %c0_7, %c0_8] : memref<8x8x512xf32, #tpu.memory_space<vmem>>, vector<8x8x512xf32>
    tpu.vector_store %arg7[%c0_6, %c0_7, %c0_8], %9 {strides = array<i32>} : memref<8x8x512xf32, #tpu.memory_space<vmem>>, vector<8x8x512xf32>,
    %cst = arith.constant 0.000000e+00 : f32
    %11 = vector.broadcast %cst : f32 to vector<8x128xf32>
    %c0_9 = arith.constant 0 : index
    %c0_10 = arith.constant 0 : index
    %12 = vector.load %arg8[%c0_9, %c0_10] : memref<8x128xf32, #tpu.memory_space<vmem>>, vector<8x128xf32>
    tpu.vector_store %arg8[%c0_9, %c0_10], %11 {strides = array<i32>} : memref<8x128xf32, #tpu.memory_space<vmem>>, vector<8x128xf32>,
    %cst_11 = arith.constant 0.000000e+00 : f32
    %13 = vector.broadcast %cst_11 : f32 to vector<8x128xf32>
    %c0_12 = arith.constant 0 : index
    %c0_13 = arith.constant 0 : index
    %14 = vector.load %arg9[%c0_12, %c0_13] : memref<8x128xf32, #tpu.memory_space<vmem>>, vector<8x128xf32>
    tpu.vector_store %arg9[%c0_12, %c0_13], %13 {strides = array<i32>} : memref<8x128xf32, #tpu.memory_space<vmem>>, vector<8x128xf32>,
    %c0_i32 = arith.constant 0 : i32
    %c0_14 = arith.constant 0 : index
    %c0_15 = arith.constant 0 : index
    %15 = vector.load %arg8[%c0_14, %c0_15] : memref<8x128xf32, #tpu.memory_space<vmem>>, vector<8x128xf32>
    %c0_16 = arith.constant 0 : index
    %c0_17 = arith.constant 0 : index
    %16 = vector.load %arg9[%c0_16, %c0_17] : memref<8x128xf32, #tpu.memory_space<vmem>>, vector<8x128xf32>
    %17 = arith.index_cast %c0_i32 : i32 to index
    %c0_18 = arith.constant 0 : index
    %c0_19 = arith.constant 0 : index
    %18 = vector.load %arg7[%17, %c0_18, %c0_19] : memref<8x8x512xf32, #tpu.memory_space<vmem>>, vector<1x8x512xf32>
    %19 = vector.shape_cast %18 : vector<1x8x512xf32> to vector<8x512xf32>
    %c0_20 = arith.constant 0 : index
    %c0_21 = arith.constant 0 : index
    %20 = vector.load %arg2[%c0_20, %c0_21] : memref<128x512xf32, #tpu.memory_space<vmem>>, vector<128x512xf32>
    %cst_22 = arith.constant dense<0.000000e+00> : vector<8x512xf32>
    %21 = tpu.matmul %15, %20, %cst_22 {dimension_numbers = #tpu.dot_dimension_numbers<[1], [0], [0], [1], [0, 0, 1, 1], [], []>} : vector<8x128xf32>, vector<128x512xf32>, vector<8x512xf32> -> vector<8x512xf32>
    %22 = arith.addf %19, %21 : vector<8x512xf32>
    %23 = vector.extract_strided_slice %22 {offsets = [0, 0], sizes = [8, 128], strides = [1, 1]} : vector<8x512xf32> to vector<8x128xf32>
    %24 = arith.negf %23 : vector<8x128xf32>
    %25 = math.exp %24 : vector<8x128xf32>
    %cst_23 = arith.constant 1.000000e+00 : f32
    %26 = vector.broadcast %cst_23 : f32 to vector<8x128xf32>
    %27 = arith.addf %26, %25 : vector<8x128xf32>
    %28 = arith.divf %26, %27 : vector<8x128xf32>
    %29 = vector.extract_strided_slice %22 {offsets = [0, 128], sizes = [8, 128], strides = [1, 1]} : vector<8x512xf32> to vector<8x128xf32>
    %30 = arith.negf %29 : vector<8x128xf32>
    %31 = math.exp %30 : vector<8x128xf32>
    %cst_24 = arith.constant 1.000000e+00 : f32
    %32 = vector.broadcast %cst_24 : f32 to vector<8x128xf32>
    %33 = arith.addf %32, %31 : vector<8x128xf32>
    %34 = arith.divf %32, %33 : vector<8x128xf32>
    %35 = vector.extract_strided_slice %22 {offsets = [0, 256], sizes = [8, 128], strides = [1, 1]} : vector<8x512xf32> to vector<8x128xf32>
    %36 = math.tanh %35 : vector<8x128xf32>
    %37 = vector.extract_strided_slice %22 {offsets = [0, 384], sizes = [8, 128], strides = [1, 1]} : vector<8x512xf32> to vector<8x128xf32>
    %38 = arith.negf %37 : vector<8x128xf32>
    %39 = math.exp %38 : vector<8x128xf32>
    %cst_25 = arith.constant 1.000000e+00 : f32
    %40 = vector.broadcast %cst_25 : f32 to vector<8x128xf32>
    %41 = arith.addf %40, %39 : vector<8x128xf32>
    %42 = arith.divf %40, %41 : vector<8x128xf32>
    %43 = arith.mulf %34, %16 : vector<8x128xf32>
    %44 = arith.mulf %28, %36 : vector<8x128xf32>
    %45 = arith.addf %43, %44 : vector<8x128xf32>
    %c0_26 = arith.constant 0 : index
    %c0_27 = arith.constant 0 : index
    %46 = vector.load %arg9[%c0_26, %c0_27] : memref<8x128xf32, #tpu.memory_space<vmem>>, vector<8x128xf32>
    tpu.vector_store %arg9[%c0_26, %c0_27], %45 {strides = array<i32>} : memref<8x128xf32, #tpu.memory_space<vmem>>, vector<8x128xf32>,
    %47 = math.tanh %45 : vector<8x128xf32>
    %48 = arith.mulf %42, %47 : vector<8x128xf32>
    %c0_28 = arith.constant 0 : index
    %c0_29 = arith.constant 0 : index
    %49 = vector.load %arg8[%c0_28, %c0_29] : memref<8x128xf32, #tpu.memory_space<vmem>>, vector<8x128xf32>
    tpu.vector_store %arg8[%c0_28, %c0_29], %48 {strides = array<i32>} : memref<8x128xf32, #tpu.memory_space<vmem>>, vector<8x128xf32>,
    %c1_i32 = arith.constant 1 : i32
    %c0_30 = arith.constant 0 : index
    %c0_31 = arith.constant 0 : index
    %50 = vector.load %arg8[%c0_30, %c0_31] : memref<8x128xf32, #tpu.memory_space<vmem>>, vector<8x128xf32>
    %c0_32 = arith.constant 0 : index
    %c0_33 = arith.constant 0 : index
    %51 = vector.load %arg9[%c0_32, %c0_33] : memref<8x128xf32, #tpu.memory_space<vmem>>, vector<8x128xf32>
    %52 = arith.index_cast %c1_i32 : i32 to index
    %c0_34 = arith.constant 0 : index
    %c0_35 = arith.constant 0 : index
    %53 = vector.load %arg7[%52, %c0_34, %c0_35] : memref<8x8x512xf32, #tpu.memory_space<vmem>>, vector<1x8x512xf32>
    %54 = vector.shape_cast %53 : vector<1x8x512xf32> to vector<8x512xf32>
    %c0_36 = arith.constant 0 : index
    %c0_37 = arith.constant 0 : index
    %55 = vector.load %arg2[%c0_36, %c0_37] : memref<128x512xf32, #tpu.memory_space<vmem>>, vector<128x512xf32>
    %cst_38 = arith.constant dense<0.000000e+00> : vector<8x512xf32>
    %56 = tpu.matmul %50, %55, %cst_38 {dimension_numbers = #tpu.dot_dimension_numbers<[1], [0], [0], [1], [0, 0, 1, 1], [], []>} : vector<8x128xf32>, vector<128x512xf32>, vector<8x512xf32> -> vector<8x512xf32>
    %57 = arith.addf %54, %56 : vector<8x512xf32>
    %58 = vector.extract_strided_slice %57 {offsets = [0, 0], sizes = [8, 128], strides = [1, 1]} : vector<8x512xf32> to vector<8x128xf32>
    %59 = arith.negf %58 : vector<8x128xf32>
    %60 = math.exp %59 : vector<8x128xf32>
    %cst_39 = arith.constant 1.000000e+00 : f32
    %61 = vector.broadcast %cst_39 : f32 to vector<8x128xf32>
    %62 = arith.addf %61, %60 : vector<8x128xf32>
    %63 = arith.divf %61, %62 : vector<8x128xf32>
    %64 = vector.extract_strided_slice %57 {offsets = [0, 128], sizes = [8, 128], strides = [1, 1]} : vector<8x512xf32> to vector<8x128xf32>
    %65 = arith.negf %64 : vector<8x128xf32>
    %66 = math.exp %65 : vector<8x128xf32>
    %cst_40 = arith.constant 1.000000e+00 : f32
    %67 = vector.broadcast %cst_40 : f32 to vector<8x128xf32>
    %68 = arith.addf %67, %66 : vector<8x128xf32>
    %69 = arith.divf %67, %68 : vector<8x128xf32>
    %70 = vector.extract_strided_slice %57 {offsets = [0, 256], sizes = [8, 128], strides = [1, 1]} : vector<8x512xf32> to vector<8x128xf32>
    %71 = math.tanh %70 : vector<8x128xf32>
    %72 = vector.extract_strided_slice %57 {offsets = [0, 384], sizes = [8, 128], strides = [1, 1]} : vector<8x512xf32> to vector<8x128xf32>
    %73 = arith.negf %72 : vector<8x128xf32>
    %74 = math.exp %73 : vector<8x128xf32>
    %cst_41 = arith.constant 1.000000e+00 : f32
    %75 = vector.broadcast %cst_41 : f32 to vector<8x128xf32>
    %76 = arith.addf %75, %74 : vector<8x128xf32>
    %77 = arith.divf %75, %76 : vector<8x128xf32>
    %78 = arith.mulf %69, %51 : vector<8x128xf32>
    %79 = arith.mulf %63, %71 : vector<8x128xf32>
    %80 = arith.addf %78, %79 : vector<8x128xf32>
    %c0_42 = arith.constant 0 : index
    %c0_43 = arith.constant 0 : index
    %81 = vector.load %arg9[%c0_42, %c0_43] : memref<8x128xf32, #tpu.memory_space<vmem>>, vector<8x128xf32>
    tpu.vector_store %arg9[%c0_42, %c0_43], %80 {strides = array<i32>} : memref<8x128xf32, #tpu.memory_space<vmem>>, vector<8x128xf32>,
    %82 = math.tanh %80 : vector<8x128xf32>
    %83 = arith.mulf %77, %82 : vector<8x128xf32>
    %c0_44 = arith.constant 0 : index
    %c0_45 = arith.constant 0 : index
    %84 = vector.load %arg8[%c0_44, %c0_45] : memref<8x128xf32, #tpu.memory_space<vmem>>, vector<8x128xf32>
    tpu.vector_store %arg8[%c0_44, %c0_45], %83 {strides = array<i32>} : memref<8x128xf32, #tpu.memory_space<vmem>>, vector<8x128xf32>,
    %c2_i32 = arith.constant 2 : i32
    %c0_46 = arith.constant 0 : index
    %c0_47 = arith.constant 0 : index
    %85 = vector.load %arg8[%c0_46, %c0_47] : memref<8x128xf32, #tpu.memory_space<vmem>>, vector<8x128xf32>
    %c0_48 = arith.constant 0 : index
    %c0_49 = arith.constant 0 : index
    %86 = vector.load %arg9[%c0_48, %c0_49] : memref<8x128xf32, #tpu.memory_space<vmem>>, vector<8x128xf32>
    %87 = arith.index_cast %c2_i32 : i32 to index
    %c0_50 = arith.constant 0 : index
    %c0_51 = arith.constant 0 : index
    %88 = vector.load %arg7[%87, %c0_50, %c0_51] : memref<8x8x512xf32, #tpu.memory_space<vmem>>, vector<1x8x512xf32>
    %89 = vector.shape_cast %88 : vector<1x8x512xf32> to vector<8x512xf32>
    %c0_52 = arith.constant 0 : index
    %c0_53 = arith.constant 0 : index
    %90 = vector.load %arg2[%c0_52, %c0_53] : memref<128x512xf32, #tpu.memory_space<vmem>>, vector<128x512xf32>
    %cst_54 = arith.constant dense<0.000000e+00> : vector<8x512xf32>
    %91 = tpu.matmul %85, %90, %cst_54 {dimension_numbers = #tpu.dot_dimension_numbers<[1], [0], [0], [1], [0, 0, 1, 1], [], []>} : vector<8x128xf32>, vector<128x512xf32>, vector<8x512xf32> -> vector<8x512xf32>
    %92 = arith.addf %89, %91 : vector<8x512xf32>
    %93 = vector.extract_strided_slice %92 {offsets = [0, 0], sizes = [8, 128], strides = [1, 1]} : vector<8x512xf32> to vector<8x128xf32>
    %94 = arith.negf %93 : vector<8x128xf32>
    %95 = math.exp %94 : vector<8x128xf32>
    %cst_55 = arith.constant 1.000000e+00 : f32
    %96 = vector.broadcast %cst_55 : f32 to vector<8x128xf32>
    %97 = arith.addf %96, %95 : vector<8x128xf32>
    %98 = arith.divf %96, %97 : vector<8x128xf32>
    %99 = vector.extract_strided_slice %92 {offsets = [0, 128], sizes = [8, 128], strides = [1, 1]} : vector<8x512xf32> to vector<8x128xf32>
    %100 = arith.negf %99 : vector<8x128xf32>
    %101 = math.exp %100 : vector<8x128xf32>
    %cst_56 = arith.constant 1.000000e+00 : f32
    %102 = vector.broadcast %cst_56 : f32 to vector<8x128xf32>
    %103 = arith.addf %102, %101 : vector<8x128xf32>
    %104 = arith.divf %102, %103 : vector<8x128xf32>
    %105 = vector.extract_strided_slice %92 {offsets = [0, 256], sizes = [8, 128], strides = [1, 1]} : vector<8x512xf32> to vector<8x128xf32>
    %106 = math.tanh %105 : vector<8x128xf32>
    %107 = vector.extract_strided_slice %92 {offsets = [0, 384], sizes = [8, 128], strides = [1, 1]} : vector<8x512xf32> to vector<8x128xf32>
    %108 = arith.negf %107 : vector<8x128xf32>
    %109 = math.exp %108 : vector<8x128xf32>
    %cst_57 = arith.constant 1.000000e+00 : f32
    %110 = vector.broadcast %cst_57 : f32 to vector<8x128xf32>
    %111 = arith.addf %110, %109 : vector<8x128xf32>
    %112 = arith.divf %110, %111 : vector<8x128xf32>
    %113 = arith.mulf %104, %86 : vector<8x128xf32>
    %114 = arith.mulf %98, %106 : vector<8x128xf32>
    %115 = arith.addf %113, %114 : vector<8x128xf32>
    %c0_58 = arith.constant 0 : index
    %c0_59 = arith.constant 0 : index
    %116 = vector.load %arg9[%c0_58, %c0_59] : memref<8x128xf32, #tpu.memory_space<vmem>>, vector<8x128xf32>
    tpu.vector_store %arg9[%c0_58, %c0_59], %115 {strides = array<i32>} : memref<8x128xf32, #tpu.memory_space<vmem>>, vector<8x128xf32>,
    %117 = math.tanh %115 : vector<8x128xf32>
    %118 = arith.mulf %112, %117 : vector<8x128xf32>
    %c0_60 = arith.constant 0 : index
    %c0_61 = arith.constant 0 : index
    %119 = vector.load %arg8[%c0_60, %c0_61] : memref<8x128xf32, #tpu.memory_space<vmem>>, vector<8x128xf32>
    tpu.vector_store %arg8[%c0_60, %c0_61], %118 {strides = array<i32>} : memref<8x128xf32, #tpu.memory_space<vmem>>, vector<8x128xf32>,
    %c3_i32 = arith.constant 3 : i32
    %c0_62 = arith.constant 0 : index
    %c0_63 = arith.constant 0 : index
    %120 = vector.load %arg8[%c0_62, %c0_63] : memref<8x128xf32, #tpu.memory_space<vmem>>, vector<8x128xf32>
    %c0_64 = arith.constant 0 : index
    %c0_65 = arith.constant 0 : index
    %121 = vector.load %arg9[%c0_64, %c0_65] : memref<8x128xf32, #tpu.memory_space<vmem>>, vector<8x128xf32>
    %122 = arith.index_cast %c3_i32 : i32 to index
    %c0_66 = arith.constant 0 : index
    %c0_67 = arith.constant 0 : index
    %123 = vector.load %arg7[%122, %c0_66, %c0_67] : memref<8x8x512xf32, #tpu.memory_space<vmem>>, vector<1x8x512xf32>
    %124 = vector.shape_cast %123 : vector<1x8x512xf32> to vector<8x512xf32>
    %c0_68 = arith.constant 0 : index
    %c0_69 = arith.constant 0 : index
    %125 = vector.load %arg2[%c0_68, %c0_69] : memref<128x512xf32, #tpu.memory_space<vmem>>, vector<128x512xf32>
    %cst_70 = arith.constant dense<0.000000e+00> : vector<8x512xf32>
    %126 = tpu.matmul %120, %125, %cst_70 {dimension_numbers = #tpu.dot_dimension_numbers<[1], [0], [0], [1], [0, 0, 1, 1], [], []>} : vector<8x128xf32>, vector<128x512xf32>, vector<8x512xf32> -> vector<8x512xf32>
    %127 = arith.addf %124, %126 : vector<8x512xf32>
    %128 = vector.extract_strided_slice %127 {offsets = [0, 0], sizes = [8, 128], strides = [1, 1]} : vector<8x512xf32> to vector<8x128xf32>
    %129 = arith.negf %128 : vector<8x128xf32>
    %130 = math.exp %129 : vector<8x128xf32>
    %cst_71 = arith.constant 1.000000e+00 : f32
    %131 = vector.broadcast %cst_71 : f32 to vector<8x128xf32>
    %132 = arith.addf %131, %130 : vector<8x128xf32>
    %133 = arith.divf %131, %132 : vector<8x128xf32>
    %134 = vector.extract_strided_slice %127 {offsets = [0, 128], sizes = [8, 128], strides = [1, 1]} : vector<8x512xf32> to vector<8x128xf32>
    %135 = arith.negf %134 : vector<8x128xf32>
    %136 = math.exp %135 : vector<8x128xf32>
    %cst_72 = arith.constant 1.000000e+00 : f32
    %137 = vector.broadcast %cst_72 : f32 to vector<8x128xf32>
    %138 = arith.addf %137, %136 : vector<8x128xf32>
    %139 = arith.divf %137, %138 : vector<8x128xf32>
    %140 = vector.extract_strided_slice %127 {offsets = [0, 256], sizes = [8, 128], strides = [1, 1]} : vector<8x512xf32> to vector<8x128xf32>
    %141 = math.tanh %140 : vector<8x128xf32>
    %142 = vector.extract_strided_slice %127 {offsets = [0, 384], sizes = [8, 128], strides = [1, 1]} : vector<8x512xf32> to vector<8x128xf32>
    %143 = arith.negf %142 : vector<8x128xf32>
    %144 = math.exp %143 : vector<8x128xf32>
    %cst_73 = arith.constant 1.000000e+00 : f32
    %145 = vector.broadcast %cst_73 : f32 to vector<8x128xf32>
    %146 = arith.addf %145, %144 : vector<8x128xf32>
    %147 = arith.divf %145, %146 : vector<8x128xf32>
    %148 = arith.mulf %139, %121 : vector<8x128xf32>
    %149 = arith.mulf %133, %141 : vector<8x128xf32>
    %150 = arith.addf %148, %149 : vector<8x128xf32>
    %c0_74 = arith.constant 0 : index
    %c0_75 = arith.constant 0 : index
    %151 = vector.load %arg9[%c0_74, %c0_75] : memref<8x128xf32, #tpu.memory_space<vmem>>, vector<8x128xf32>
    tpu.vector_store %arg9[%c0_74, %c0_75], %150 {strides = array<i32>} : memref<8x128xf32, #tpu.memory_space<vmem>>, vector<8x128xf32>,
    %152 = math.tanh %150 : vector<8x128xf32>
    %153 = arith.mulf %147, %152 : vector<8x128xf32>
    %c0_76 = arith.constant 0 : index
    %c0_77 = arith.constant 0 : index
    %154 = vector.load %arg8[%c0_76, %c0_77] : memref<8x128xf32, #tpu.memory_space<vmem>>, vector<8x128xf32>
    tpu.vector_store %arg8[%c0_76, %c0_77], %153 {strides = array<i32>} : memref<8x128xf32, #tpu.memory_space<vmem>>, vector<8x128xf32>,
    %c4_i32 = arith.constant 4 : i32
    %c0_78 = arith.constant 0 : index
    %c0_79 = arith.constant 0 : index
    %155 = vector.load %arg8[%c0_78, %c0_79] : memref<8x128xf32, #tpu.memory_space<vmem>>, vector<8x128xf32>
    %c0_80 = arith.constant 0 : index
    %c0_81 = arith.constant 0 : index
    %156 = vector.load %arg9[%c0_80, %c0_81] : memref<8x128xf32, #tpu.memory_space<vmem>>, vector<8x128xf32>
    %157 = arith.index_cast %c4_i32 : i32 to index
    %c0_82 = arith.constant 0 : index
    %c0_83 = arith.constant 0 : index
    %158 = vector.load %arg7[%157, %c0_82, %c0_83] : memref<8x8x512xf32, #tpu.memory_space<vmem>>, vector<1x8x512xf32>
    %159 = vector.shape_cast %158 : vector<1x8x512xf32> to vector<8x512xf32>
    %c0_84 = arith.constant 0 : index
    %c0_85 = arith.constant 0 : index
    %160 = vector.load %arg2[%c0_84, %c0_85] : memref<128x512xf32, #tpu.memory_space<vmem>>, vector<128x512xf32>
    %cst_86 = arith.constant dense<0.000000e+00> : vector<8x512xf32>
    %161 = tpu.matmul %155, %160, %cst_86 {dimension_numbers = #tpu.dot_dimension_numbers<[1], [0], [0], [1], [0, 0, 1, 1], [], []>} : vector<8x128xf32>, vector<128x512xf32>, vector<8x512xf32> -> vector<8x512xf32>
    %162 = arith.addf %159, %161 : vector<8x512xf32>
    %163 = vector.extract_strided_slice %162 {offsets = [0, 0], sizes = [8, 128], strides = [1, 1]} : vector<8x512xf32> to vector<8x128xf32>
    %164 = arith.negf %163 : vector<8x128xf32>
    %165 = math.exp %164 : vector<8x128xf32>
    %cst_87 = arith.constant 1.000000e+00 : f32
    %166 = vector.broadcast %cst_87 : f32 to vector<8x128xf32>
    %167 = arith.addf %166, %165 : vector<8x128xf32>
    %168 = arith.divf %166, %167 : vector<8x128xf32>
    %169 = vector.extract_strided_slice %162 {offsets = [0, 128], sizes = [8, 128], strides = [1, 1]} : vector<8x512xf32> to vector<8x128xf32>
    %170 = arith.negf %169 : vector<8x128xf32>
    %171 = math.exp %170 : vector<8x128xf32>
    %cst_88 = arith.constant 1.000000e+00 : f32
    %172 = vector.broadcast %cst_88 : f32 to vector<8x128xf32>
    %173 = arith.addf %172, %171 : vector<8x128xf32>
    %174 = arith.divf %172, %173 : vector<8x128xf32>
    %175 = vector.extract_strided_slice %162 {offsets = [0, 256], sizes = [8, 128], strides = [1, 1]} : vector<8x512xf32> to vector<8x128xf32>
    %176 = math.tanh %175 : vector<8x128xf32>
    %177 = vector.extract_strided_slice %162 {offsets = [0, 384], sizes = [8, 128], strides = [1, 1]} : vector<8x512xf32> to vector<8x128xf32>
    %178 = arith.negf %177 : vector<8x128xf32>
    %179 = math.exp %178 : vector<8x128xf32>
    %cst_89 = arith.constant 1.000000e+00 : f32
    %180 = vector.broadcast %cst_89 : f32 to vector<8x128xf32>
    %181 = arith.addf %180, %179 : vector<8x128xf32>
    %182 = arith.divf %180, %181 : vector<8x128xf32>
    %183 = arith.mulf %174, %156 : vector<8x128xf32>
    %184 = arith.mulf %168, %176 : vector<8x128xf32>
    %185 = arith.addf %183, %184 : vector<8x128xf32>
    %c0_90 = arith.constant 0 : index
    %c0_91 = arith.constant 0 : index
    %186 = vector.load %arg9[%c0_90, %c0_91] : memref<8x128xf32, #tpu.memory_space<vmem>>, vector<8x128xf32>
    tpu.vector_store %arg9[%c0_90, %c0_91], %185 {strides = array<i32>} : memref<8x128xf32, #tpu.memory_space<vmem>>, vector<8x128xf32>,
    %187 = math.tanh %185 : vector<8x128xf32>
    %188 = arith.mulf %182, %187 : vector<8x128xf32>
    %c0_92 = arith.constant 0 : index
    %c0_93 = arith.constant 0 : index
    %189 = vector.load %arg8[%c0_92, %c0_93] : memref<8x128xf32, #tpu.memory_space<vmem>>, vector<8x128xf32>
    tpu.vector_store %arg8[%c0_92, %c0_93], %188 {strides = array<i32>} : memref<8x128xf32, #tpu.memory_space<vmem>>, vector<8x128xf32>,
    %c5_i32 = arith.constant 5 : i32
    %c0_94 = arith.constant 0 : index
    %c0_95 = arith.constant 0 : index
    %190 = vector.load %arg8[%c0_94, %c0_95] : memref<8x128xf32, #tpu.memory_space<vmem>>, vector<8x128xf32>
    %c0_96 = arith.constant 0 : index
    %c0_97 = arith.constant 0 : index
    %191 = vector.load %arg9[%c0_96, %c0_97] : memref<8x128xf32, #tpu.memory_space<vmem>>, vector<8x128xf32>
    %192 = arith.index_cast %c5_i32 : i32 to index
    %c0_98 = arith.constant 0 : index
    %c0_99 = arith.constant 0 : index
    %193 = vector.load %arg7[%192, %c0_98, %c0_99] : memref<8x8x512xf32, #tpu.memory_space<vmem>>, vector<1x8x512xf32>
    %194 = vector.shape_cast %193 : vector<1x8x512xf32> to vector<8x512xf32>
    %c0_100 = arith.constant 0 : index
    %c0_101 = arith.constant 0 : index
    %195 = vector.load %arg2[%c0_100, %c0_101] : memref<128x512xf32, #tpu.memory_space<vmem>>, vector<128x512xf32>
    %cst_102 = arith.constant dense<0.000000e+00> : vector<8x512xf32>
    %196 = tpu.matmul %190, %195, %cst_102 {dimension_numbers = #tpu.dot_dimension_numbers<[1], [0], [0], [1], [0, 0, 1, 1], [], []>} : vector<8x128xf32>, vector<128x512xf32>, vector<8x512xf32> -> vector<8x512xf32>
    %197 = arith.addf %194, %196 : vector<8x512xf32>
    %198 = vector.extract_strided_slice %197 {offsets = [0, 0], sizes = [8, 128], strides = [1, 1]} : vector<8x512xf32> to vector<8x128xf32>
    %199 = arith.negf %198 : vector<8x128xf32>
    %200 = math.exp %199 : vector<8x128xf32>
    %cst_103 = arith.constant 1.000000e+00 : f32
    %201 = vector.broadcast %cst_103 : f32 to vector<8x128xf32>
    %202 = arith.addf %201, %200 : vector<8x128xf32>
    %203 = arith.divf %201, %202 : vector<8x128xf32>
    %204 = vector.extract_strided_slice %197 {offsets = [0, 128], sizes = [8, 128], strides = [1, 1]} : vector<8x512xf32> to vector<8x128xf32>
    %205 = arith.negf %204 : vector<8x128xf32>
    %206 = math.exp %205 : vector<8x128xf32>
    %cst_104 = arith.constant 1.000000e+00 : f32
    %207 = vector.broadcast %cst_104 : f32 to vector<8x128xf32>
    %208 = arith.addf %207, %206 : vector<8x128xf32>
    %209 = arith.divf %207, %208 : vector<8x128xf32>
    %210 = vector.extract_strided_slice %197 {offsets = [0, 256], sizes = [8, 128], strides = [1, 1]} : vector<8x512xf32> to vector<8x128xf32>
    %211 = math.tanh %210 : vector<8x128xf32>
    %212 = vector.extract_strided_slice %197 {offsets = [0, 384], sizes = [8, 128], strides = [1, 1]} : vector<8x512xf32> to vector<8x128xf32>
    %213 = arith.negf %212 : vector<8x128xf32>
    %214 = math.exp %213 : vector<8x128xf32>
    %cst_105 = arith.constant 1.000000e+00 : f32
    %215 = vector.broadcast %cst_105 : f32 to vector<8x128xf32>
    %216 = arith.addf %215, %214 : vector<8x128xf32>
    %217 = arith.divf %215, %216 : vector<8x128xf32>
    %218 = arith.mulf %209, %191 : vector<8x128xf32>
    %219 = arith.mulf %203, %211 : vector<8x128xf32>
    %220 = arith.addf %218, %219 : vector<8x128xf32>
    %c0_106 = arith.constant 0 : index
    %c0_107 = arith.constant 0 : index
    %221 = vector.load %arg9[%c0_106, %c0_107] : memref<8x128xf32, #tpu.memory_space<vmem>>, vector<8x128xf32>
    tpu.vector_store %arg9[%c0_106, %c0_107], %220 {strides = array<i32>} : memref<8x128xf32, #tpu.memory_space<vmem>>, vector<8x128xf32>,
    %222 = math.tanh %220 : vector<8x128xf32>
    %223 = arith.mulf %217, %222 : vector<8x128xf32>
    %c0_108 = arith.constant 0 : index
    %c0_109 = arith.constant 0 : index
    %224 = vector.load %arg8[%c0_108, %c0_109] : memref<8x128xf32, #tpu.memory_space<vmem>>, vector<8x128xf32>
    tpu.vector_store %arg8[%c0_108, %c0_109], %223 {strides = array<i32>} : memref<8x128xf32, #tpu.memory_space<vmem>>, vector<8x128xf32>,
    %c6_i32 = arith.constant 6 : i32
    %c0_110 = arith.constant 0 : index
    %c0_111 = arith.constant 0 : index
    %225 = vector.load %arg8[%c0_110, %c0_111] : memref<8x128xf32, #tpu.memory_space<vmem>>, vector<8x128xf32>
    %c0_112 = arith.constant 0 : index
    %c0_113 = arith.constant 0 : index
    %226 = vector.load %arg9[%c0_112, %c0_113] : memref<8x128xf32, #tpu.memory_space<vmem>>, vector<8x128xf32>
    %227 = arith.index_cast %c6_i32 : i32 to index
    %c0_114 = arith.constant 0 : index
    %c0_115 = arith.constant 0 : index
    %228 = vector.load %arg7[%227, %c0_114, %c0_115] : memref<8x8x512xf32, #tpu.memory_space<vmem>>, vector<1x8x512xf32>
    %229 = vector.shape_cast %228 : vector<1x8x512xf32> to vector<8x512xf32>
    %c0_116 = arith.constant 0 : index
    %c0_117 = arith.constant 0 : index
    %230 = vector.load %arg2[%c0_116, %c0_117] : memref<128x512xf32, #tpu.memory_space<vmem>>, vector<128x512xf32>
    %cst_118 = arith.constant dense<0.000000e+00> : vector<8x512xf32>
    %231 = tpu.matmul %225, %230, %cst_118 {dimension_numbers = #tpu.dot_dimension_numbers<[1], [0], [0], [1], [0, 0, 1, 1], [], []>} : vector<8x128xf32>, vector<128x512xf32>, vector<8x512xf32> -> vector<8x512xf32>
    %232 = arith.addf %229, %231 : vector<8x512xf32>
    %233 = vector.extract_strided_slice %232 {offsets = [0, 0], sizes = [8, 128], strides = [1, 1]} : vector<8x512xf32> to vector<8x128xf32>
    %234 = arith.negf %233 : vector<8x128xf32>
    %235 = math.exp %234 : vector<8x128xf32>
    %cst_119 = arith.constant 1.000000e+00 : f32
    %236 = vector.broadcast %cst_119 : f32 to vector<8x128xf32>
    %237 = arith.addf %236, %235 : vector<8x128xf32>
    %238 = arith.divf %236, %237 : vector<8x128xf32>
    %239 = vector.extract_strided_slice %232 {offsets = [0, 128], sizes = [8, 128], strides = [1, 1]} : vector<8x512xf32> to vector<8x128xf32>
    %240 = arith.negf %239 : vector<8x128xf32>
    %241 = math.exp %240 : vector<8x128xf32>
    %cst_120 = arith.constant 1.000000e+00 : f32
    %242 = vector.broadcast %cst_120 : f32 to vector<8x128xf32>
    %243 = arith.addf %242, %241 : vector<8x128xf32>
    %244 = arith.divf %242, %243 : vector<8x128xf32>
    %245 = vector.extract_strided_slice %232 {offsets = [0, 256], sizes = [8, 128], strides = [1, 1]} : vector<8x512xf32> to vector<8x128xf32>
    %246 = math.tanh %245 : vector<8x128xf32>
    %247 = vector.extract_strided_slice %232 {offsets = [0, 384], sizes = [8, 128], strides = [1, 1]} : vector<8x512xf32> to vector<8x128xf32>
    %248 = arith.negf %247 : vector<8x128xf32>
    %249 = math.exp %248 : vector<8x128xf32>
    %cst_121 = arith.constant 1.000000e+00 : f32
    %250 = vector.broadcast %cst_121 : f32 to vector<8x128xf32>
    %251 = arith.addf %250, %249 : vector<8x128xf32>
    %252 = arith.divf %250, %251 : vector<8x128xf32>
    %253 = arith.mulf %244, %226 : vector<8x128xf32>
    %254 = arith.mulf %238, %246 : vector<8x128xf32>
    %255 = arith.addf %253, %254 : vector<8x128xf32>
    %c0_122 = arith.constant 0 : index
    %c0_123 = arith.constant 0 : index
    %256 = vector.load %arg9[%c0_122, %c0_123] : memref<8x128xf32, #tpu.memory_space<vmem>>, vector<8x128xf32>
    tpu.vector_store %arg9[%c0_122, %c0_123], %255 {strides = array<i32>} : memref<8x128xf32, #tpu.memory_space<vmem>>, vector<8x128xf32>,
    %257 = math.tanh %255 : vector<8x128xf32>
    %258 = arith.mulf %252, %257 : vector<8x128xf32>
    %c0_124 = arith.constant 0 : index
    %c0_125 = arith.constant 0 : index
    %259 = vector.load %arg8[%c0_124, %c0_125] : memref<8x128xf32, #tpu.memory_space<vmem>>, vector<8x128xf32>
    tpu.vector_store %arg8[%c0_124, %c0_125], %258 {strides = array<i32>} : memref<8x128xf32, #tpu.memory_space<vmem>>, vector<8x128xf32>,
    %c7_i32 = arith.constant 7 : i32
    %c0_126 = arith.constant 0 : index
    %c0_127 = arith.constant 0 : index
    %260 = vector.load %arg8[%c0_126, %c0_127] : memref<8x128xf32, #tpu.memory_space<vmem>>, vector<8x128xf32>
    %c0_128 = arith.constant 0 : index
    %c0_129 = arith.constant 0 : index
    %261 = vector.load %arg9[%c0_128, %c0_129] : memref<8x128xf32, #tpu.memory_space<vmem>>, vector<8x128xf32>
    %262 = arith.index_cast %c7_i32 : i32 to index
    %c0_130 = arith.constant 0 : index
    %c0_131 = arith.constant 0 : index
    %263 = vector.load %arg7[%262, %c0_130, %c0_131] : memref<8x8x512xf32, #tpu.memory_space<vmem>>, vector<1x8x512xf32>
    %264 = vector.shape_cast %263 : vector<1x8x512xf32> to vector<8x512xf32>
    %c0_132 = arith.constant 0 : index
    %c0_133 = arith.constant 0 : index
    %265 = vector.load %arg2[%c0_132, %c0_133] : memref<128x512xf32, #tpu.memory_space<vmem>>, vector<128x512xf32>
    %cst_134 = arith.constant dense<0.000000e+00> : vector<8x512xf32>
    %266 = tpu.matmul %260, %265, %cst_134 {dimension_numbers = #tpu.dot_dimension_numbers<[1], [0], [0], [1], [0, 0, 1, 1], [], []>} : vector<8x128xf32>, vector<128x512xf32>, vector<8x512xf32> -> vector<8x512xf32>
    %267 = arith.addf %264, %266 : vector<8x512xf32>
    %268 = vector.extract_strided_slice %267 {offsets = [0, 0], sizes = [8, 128], strides = [1, 1]} : vector<8x512xf32> to vector<8x128xf32>
    %269 = arith.negf %268 : vector<8x128xf32>
    %270 = math.exp %269 : vector<8x128xf32>
    %cst_135 = arith.constant 1.000000e+00 : f32
    %271 = vector.broadcast %cst_135 : f32 to vector<8x128xf32>
    %272 = arith.addf %271, %270 : vector<8x128xf32>
    %273 = arith.divf %271, %272 : vector<8x128xf32>
    %274 = vector.extract_strided_slice %267 {offsets = [0, 128], sizes = [8, 128], strides = [1, 1]} : vector<8x512xf32> to vector<8x128xf32>
    %275 = arith.negf %274 : vector<8x128xf32>
    %276 = math.exp %275 : vector<8x128xf32>
    %cst_136 = arith.constant 1.000000e+00 : f32
    %277 = vector.broadcast %cst_136 : f32 to vector<8x128xf32>
    %278 = arith.addf %277, %276 : vector<8x128xf32>
    %279 = arith.divf %277, %278 : vector<8x128xf32>
    %280 = vector.extract_strided_slice %267 {offsets = [0, 256], sizes = [8, 128], strides = [1, 1]} : vector<8x512xf32> to vector<8x128xf32>
    %281 = math.tanh %280 : vector<8x128xf32>
    %282 = vector.extract_strided_slice %267 {offsets = [0, 384], sizes = [8, 128], strides = [1, 1]} : vector<8x512xf32> to vector<8x128xf32>
    %283 = arith.negf %282 : vector<8x128xf32>
    %284 = math.exp %283 : vector<8x128xf32>
    %cst_137 = arith.constant 1.000000e+00 : f32
    %285 = vector.broadcast %cst_137 : f32 to vector<8x128xf32>
    %286 = arith.addf %285, %284 : vector<8x128xf32>
    %287 = arith.divf %285, %286 : vector<8x128xf32>
    %288 = arith.mulf %279, %261 : vector<8x128xf32>
    %289 = arith.mulf %273, %281 : vector<8x128xf32>
    %290 = arith.addf %288, %289 : vector<8x128xf32>
    %c0_138 = arith.constant 0 : index
    %c0_139 = arith.constant 0 : index
    %291 = vector.load %arg9[%c0_138, %c0_139] : memref<8x128xf32, #tpu.memory_space<vmem>>, vector<8x128xf32>
    tpu.vector_store %arg9[%c0_138, %c0_139], %290 {strides = array<i32>} : memref<8x128xf32, #tpu.memory_space<vmem>>, vector<8x128xf32>,
    %292 = math.tanh %290 : vector<8x128xf32>
    %293 = arith.mulf %287, %292 : vector<8x128xf32>
    %c0_140 = arith.constant 0 : index
    %c0_141 = arith.constant 0 : index
    %294 = vector.load %arg8[%c0_140, %c0_141] : memref<8x128xf32, #tpu.memory_space<vmem>>, vector<8x128xf32>
    tpu.vector_store %arg8[%c0_140, %c0_141], %293 {strides = array<i32>} : memref<8x128xf32, #tpu.memory_space<vmem>>, vector<8x128xf32>,
    %c8_i32 = arith.constant 8 : i32
    %c0_142 = arith.constant 0 : index
    %c0_143 = arith.constant 0 : index
    %295 = vector.load %arg8[%c0_142, %c0_143] : memref<8x128xf32, #tpu.memory_space<vmem>>, vector<8x128xf32>
    %c0_144 = arith.constant 0 : index
    %c0_145 = arith.constant 0 : index
    %296 = vector.load %arg4[%c0_144, %c0_145] : memref<128x1xf32, #tpu.memory_space<vmem>>, vector<128x1xf32>
    %cst_146 = arith.constant dense<0.000000e+00> : vector<8x1xf32>
    %297 = tpu.matmul %295, %296, %cst_146 {dimension_numbers = #tpu.dot_dimension_numbers<[1], [0], [0], [1], [0, 0, 1, 1], [], []>} : vector<8x128xf32>, vector<128x1xf32>, vector<8x1xf32> -> vector<8x1xf32>
    %c0_147 = arith.constant 0 : index
    %c0_148 = arith.constant 0 : index
    %298 = vector.load %arg5[%c0_147, %c0_148] : memref<1x1xf32, #tpu.memory_space<vmem>>, vector<1x1xf32>
    %299 = vector.broadcast %298 : vector<1x1xf32> to vector<8x1xf32>
    %300 = arith.addf %297, %299 : vector<8x1xf32>
    %c0_149 = arith.constant 0 : index
    %c0_150 = arith.constant 0 : index
    %301 = vector.load %arg6[%c0_149, %c0_150] : memref<8x1xf32, #tpu.memory_space<vmem>>, vector<8x1xf32>
    tpu.vector_store %arg6[%c0_149, %c0_150], %300 {strides = array<i32>} : memref<8x1xf32, #tpu.memory_space<vmem>>, vector<8x1xf32>,
    return
  }
}

</mosaic_0001>

<llo_original>
// kernel: tpu_custom_call.1
$region0: #{tpu_custom_call.1}
  #allocation0 [shape = 'u32[]', space=smem, size = 0x4, offset = 0x4, fixed_abs, tag = 'smem constant byte address 0x4 - core index']
  #allocation1 [shape = 'u32[72,128]{1,0:T(1,128)}', space=vmem, size = 0x9000, scoped, tag = 'internal scratch']
  #allocation2 [shape = 'f32[8,8,512]{2,1,0:T(8,128)}', space=vmem, size = 0x20000, scoped, tag = 'scratch operand']
  #allocation3 [shape = 'f32[8,128]{1,0:T(8,128)}', space=vmem, size = 0x1000, scoped, tag = 'scratch operand']
  #allocation4 [shape = 'f32[8,128]{1,0:T(8,128)}', space=vmem, size = 0x1000, scoped, tag = 'scratch operand']
  #allocation5 [shape = 'f32[1,1]{1,0:T(1,128)S(1)}', space=vmem, size = 0x200, scoped, tag = 'scoped memory for tpu_custom_call.1']
  %s0 = inlined_call_operand.vmem [shape: f32[8,8,1], index: 0, kind: input, shape index: {}]
  %s1 = inlined_call_operand.vmem [shape: f32[1,512], index: 1, kind: input, shape index: {}]
  %s2 = inlined_call_operand.hbm [shape: f32[128,512], index: 2, kind: input, shape index: {}]
  %s3 = inlined_call_operand.vmem [shape: f32[1,512], index: 3, kind: input, shape index: {}]
  %s4 = inlined_call_operand.vmem [shape: f32[128,1], index: 4, kind: input, shape index: {}]
  %s5 = inlined_call_operand.<no memory space> [shape: f32[1,1], index: 5, kind: input, shape index: {}]
  %s6 = inlined_call_operand.vmem [shape: f32[8,1], index: 6, kind: output, shape index: {}]
  %s7 = sld [smem:[#allocation0]]
  $region38: #{tpu_custom_call.1} parent=0
    _
  %s9 = ssub.s32 1, %s7
  %s10 = scalar_select 0, %s9, %s7
  %v11 = vstv %s5
  %12 = vst [vmem:[#allocation5] sm:$0x1] %v11
  $region1: #{tpu_custom_call.1} parent=0
    #allocation6 [shape = 'u8[262144]{0}', space=vmem, size = 0x40000, scoped, tag = 'input window, operand 2, single buffered']
    #allocation7 [shape = 's32[1]{0}', space=sflag, size = 0x4, scoped, tag = 'scoped memory for tpu_custom_call.1']
    %13 = vsyncpa [#allocation7], 0
    // Predicated region
    $region2: #{tpu_custom_call.1} parent=1 // pred_check
      _
    $region3: #{tpu_custom_call.1} parent=1 // pred_check_branch
      %15 = sbr.rel (0) target = $region5
    $region4: #{tpu_custom_call.1} parent=1 // pred_region
      _
    $region5: #{tpu_custom_call.1} parent=1 // pred_fallthru
      _
    // Predicated region
    $region6: #{tpu_custom_call.1} parent=1 // pred_check
      _
    $region7: #{tpu_custom_call.1} parent=1 // pred_check_branch
      %17 = sbr.rel (0) target = $region9
    $region8: #{tpu_custom_call.1} parent=1 // pred_region
      _
    $region9: #{tpu_custom_call.1} parent=1 // pred_fallthru
      _
    // Predicated region
    $region10: #{tpu_custom_call.1} parent=1 // pred_check
      _
    $region11: #{tpu_custom_call.1} parent=1 // pred_check_branch
      %19 = sbr.rel (0) target = $region13
    $region12: #{tpu_custom_call.1} parent=1 // pred_region
      %21 = vsyncadd [#allocation7], 0
      %s22 = sshll.u32 %s2, 4
      %s23 = int_to_ptr.hbm [resolvable:$true] %s22
      %s24 = sshll.u32 [#allocation6], 4
      %s25 = int_to_ptr.vmem [resolvable:$true] %s24
      %30 = dma.hbm_to_vmem [thread:$0]  %s23, 8192, %s25, [#allocation7], 512, 512, 32
    $region13: #{tpu_custom_call.1} parent=1 // pred_fallthru
      _
    // Predicated region
    $region14: #{tpu_custom_call.1} parent=1 // pred_check
      _
    $region15: #{tpu_custom_call.1} parent=1 // pred_check_branch
      %32 = sbr.rel (0) target = $region17
    $region16: #{tpu_custom_call.1} parent=1 // pred_region
      _
    $region17: #{tpu_custom_call.1} parent=1 // pred_fallthru
      _
    // Predicated region
    $region18: #{tpu_custom_call.1} parent=1 // pred_check
      _
    $region19: #{tpu_custom_call.1} parent=1 // pred_check_branch
      %34 = sbr.rel (0) target = $region21
    $region20: #{tpu_custom_call.1} parent=1 // pred_region
      _
    $region21: #{tpu_custom_call.1} parent=1 // pred_fallthru
      _
    // Predicated region
    $region22: #{tpu_custom_call.1} parent=1 // pred_check
      _
    $region23: #{tpu_custom_call.1} parent=1 // pred_check_branch
      %36 = sbr.rel (0) target = $region25
    $region24: #{tpu_custom_call.1} parent=1 // pred_region
      _
    $region25: #{tpu_custom_call.1} parent=1 // pred_fallthru
      _
    // Predicated region
    $region26: #{tpu_custom_call.1} parent=1 // pred_check
      _
    $region27: #{tpu_custom_call.1} parent=1 // pred_check_branch
      %38 = sbr.rel (0) target = $region29
    $region28: #{tpu_custom_call.1} parent=1 // pred_region
      %40 = dma.done [#allocation7], 8192
    $region29: #{tpu_custom_call.1} parent=1 // pred_fallthru
      _
    %v41 = vld [vmem:[%s0] sm:$0xff]
    %v42 = vld [vmem:[%s0 + $0x8] sm:$0xff]
    %v43 = vld [vmem:[%s0 + $0x10] sm:$0xff]
    %v44 = vld [vmem:[%s0 + $0x18] sm:$0xff]
    %v45 = vld [vmem:[%s0 + $0x20] sm:$0xff]
    %v46 = vld [vmem:[%s0 + $0x28] sm:$0xff]
    %v47 = vld [vmem:[%s0 + $0x30] sm:$0xff]
    %v48 = vld [vmem:[%s0 + $0x38] sm:$0xff]
    %v49 = vld [vmem:[%s1] sm:$0xf]
    %51 = vset.pattern.permute.xlu0 0
    %52 = vperm.xlu0 %51, %v41
    %v53 = vpop.permute.xlu0 %52
    %56 = vset.pattern.permute.xlu0 0
    %57 = vperm.xlu0 %56, %v42
    %v58 = vpop.permute.xlu0 %57
    %61 = vset.pattern.permute.xlu0 0
    %62 = vperm.xlu0 %61, %v43
    %v63 = vpop.permute.xlu0 %62
    %66 = vset.pattern.permute.xlu0 0
    %67 = vperm.xlu0 %66, %v44
    %v68 = vpop.permute.xlu0 %67
    %71 = vset.pattern.permute.xlu0 0
    %72 = vperm.xlu0 %71, %v45
    %v73 = vpop.permute.xlu0 %72
    %76 = vset.pattern.permute.xlu0 0
    %77 = vperm.xlu0 %76, %v46
    %v78 = vpop.permute.xlu0 %77
    %81 = vset.pattern.permute.xlu0 0
    %82 = vperm.xlu0 %81, %v47
    %v83 = vpop.permute.xlu0 %82
    %86 = vset.pattern.permute.xlu0 0
    %87 = vperm.xlu0 %86, %v48
    %v88 = vpop.permute.xlu0 %87
    %v91 = vperm.slane %v49, 0
    %v92 = vperm.slane %v49, 1
    %v93 = vperm.slane %v49, 2
    %v94 = vperm.slane %v49, 3
    %v99 = vmul.f32 %v53, %v91
    %v100 = vmul.f32 %v53, %v92
    %v101 = vmul.f32 %v53, %v93
    %v102 = vmul.f32 %v53, %v94
    %v103 = vmul.f32 %v58, %v91
    %v104 = vmul.f32 %v58, %v92
    %v105 = vmul.f32 %v58, %v93
    %v106 = vmul.f32 %v58, %v94
    %v107 = vmul.f32 %v63, %v91
    %v108 = vmul.f32 %v63, %v92
    %v109 = vmul.f32 %v63, %v93
    %v110 = vmul.f32 %v63, %v94
    %v111 = vmul.f32 %v68, %v91
    %v112 = vmul.f32 %v68, %v92
    %v113 = vmul.f32 %v68, %v93
    %v114 = vmul.f32 %v68, %v94
    %v115 = vmul.f32 %v73, %v91
    %v116 = vmul.f32 %v73, %v92
    %v117 = vmul.f32 %v73, %v93
    %v118 = vmul.f32 %v73, %v94
    %v119 = vmul.f32 %v78, %v91
    %v120 = vmul.f32 %v78, %v92
    %v121 = vmul.f32 %v78, %v93
    %v122 = vmul.f32 %v78, %v94
    %v123 = vmul.f32 %v83, %v91
    %v124 = vmul.f32 %v83, %v92
    %v125 = vmul.f32 %v83, %v93
    %v126 = vmul.f32 %v83, %v94
    %v127 = vmul.f32 %v88, %v91
    %v128 = vmul.f32 %v88, %v92
    %v129 = vmul.f32 %v88, %v93
    %v130 = vmul.f32 %v88, %v94
    %v131 = vld [vmem:[%s3] sm:$0xf]
    %v133 = vperm.slane %v131, 0
    %v134 = vperm.slane %v131, 1
    %v135 = vperm.slane %v131, 2
    %v136 = vperm.slane %v131, 3
    %v141 = vadd.f32 %v99, %v133
    %v142 = vadd.f32 %v100, %v134
    %v143 = vadd.f32 %v101, %v135
    %v144 = vadd.f32 %v102, %v136
    %v145 = vadd.f32 %v103, %v133
    %v146 = vadd.f32 %v104, %v134
    %v147 = vadd.f32 %v105, %v135
    %v148 = vadd.f32 %v106, %v136
    %v149 = vadd.f32 %v107, %v133
    %v150 = vadd.f32 %v108, %v134
    %v151 = vadd.f32 %v109, %v135
    %v152 = vadd.f32 %v110, %v136
    %v153 = vadd.f32 %v111, %v133
    %v154 = vadd.f32 %v112, %v134
    %v155 = vadd.f32 %v113, %v135
    %v156 = vadd.f32 %v114, %v136
    %v157 = vadd.f32 %v115, %v133
    %v158 = vadd.f32 %v116, %v134
    %v159 = vadd.f32 %v117, %v135
    %v160 = vadd.f32 %v118, %v136
    %v161 = vadd.f32 %v119, %v133
    %v162 = vadd.f32 %v120, %v134
    %v163 = vadd.f32 %v121, %v135
    %v164 = vadd.f32 %v122, %v136
    %v165 = vadd.f32 %v123, %v133
    %v166 = vadd.f32 %v124, %v134
    %v167 = vadd.f32 %v125, %v135
    %v168 = vadd.f32 %v126, %v136
    %v169 = vadd.f32 %v127, %v133
    %v170 = vadd.f32 %v128, %v134
    %v171 = vadd.f32 %v129, %v135
    %v172 = vadd.f32 %v130, %v136
    %173 = vst [vmem:[#allocation2] sm:$0xff] %v141
    %174 = vst [vmem:[#allocation2 + $0x8] sm:$0xff] %v142
    %175 = vst [vmem:[#allocation2 + $0x10] sm:$0xff] %v143
    %176 = vst [vmem:[#allocation2 + $0x18] sm:$0xff] %v144
    %177 = vst [vmem:[#allocation2 + $0x20] sm:$0xff] %v145
    %178 = vst [vmem:[#allocation2 + $0x28] sm:$0xff] %v146
    %179 = vst [vmem:[#allocation2 + $0x30] sm:$0xff] %v147
    %180 = vst [vmem:[#allocation2 + $0x38] sm:$0xff] %v148
    %181 = vst [vmem:[#allocation2 + $0x40] sm:$0xff] %v149
    %182 = vst [vmem:[#allocation2 + $0x48] sm:$0xff] %v150
    %183 = vst [vmem:[#allocation2 + $0x50] sm:$0xff] %v151
    %184 = vst [vmem:[#allocation2 + $0x58] sm:$0xff] %v152
    %185 = vst [vmem:[#allocation2 + $0x60] sm:$0xff] %v153
    %186 = vst [vmem:[#allocation2 + $0x68] sm:$0xff] %v154
    %187 = vst [vmem:[#allocation2 + $0x70] sm:$0xff] %v155
    %188 = vst [vmem:[#allocation2 + $0x78] sm:$0xff] %v156
    %189 = vst [vmem:[#allocation2 + $0x80] sm:$0xff] %v157
    %190 = vst [vmem:[#allocation2 + $0x88] sm:$0xff] %v158
    %191 = vst [vmem:[#allocation2 + $0x90] sm:$0xff] %v159
    %192 = vst [vmem:[#allocation2 + $0x98] sm:$0xff] %v160
    %193 = vst [vmem:[#allocation2 + $0xa0] sm:$0xff] %v161
    %194 = vst [vmem:[#allocation2 + $0xa8] sm:$0xff] %v162
    %195 = vst [vmem:[#allocation2 + $0xb0] sm:$0xff] %v163
    %196 = vst [vmem:[#allocation2 + $0xb8] sm:$0xff] %v164
    %197 = vst [vmem:[#allocation2 + $0xc0] sm:$0xff] %v165
    %198 = vst [vmem:[#allocation2 + $0xc8] sm:$0xff] %v166
    %199 = vst [vmem:[#allocation2 + $0xd0] sm:$0xff] %v167
    %200 = vst [vmem:[#allocation2 + $0xd8] sm:$0xff] %v168
    %201 = vst [vmem:[#allocation2 + $0xe0] sm:$0xff] %v169
    %202 = vst [vmem:[#allocation2 + $0xe8] sm:$0xff] %v170
    %203 = vst [vmem:[#allocation2 + $0xf0] sm:$0xff] %v171
    %204 = vst [vmem:[#allocation2 + $0xf8] sm:$0xff] %v172
    %205 = vst [vmem:[#allocation3] sm:$0xff] 0.0
    %206 = vst [vmem:[#allocation4] sm:$0xff] 0.0
    %v207 = vld [vmem:[#allocation3] sm:$0xff]
    %v208 = vld [vmem:[#allocation4] sm:$0xff]
    %v209 = vld [vmem:[#allocation2] sm:$0xff]
    %v210 = vld [vmem:[#allocation2 + $0x8] sm:$0xff]
    %v211 = vld [vmem:[#allocation2 + $0x10] sm:$0xff]
    %v212 = vld [vmem:[#allocation2 + $0x18] sm:$0xff]
    %v213 = vld [vmem:[#allocation6] sm:$0xff]
    %v214 = vld [vmem:[#allocation6 + $0x8] sm:$0xff]
    %v215 = vld [vmem:[#allocation6 + $0x10] sm:$0xff]
    %v216 = vld [vmem:[#allocation6 + $0x18] sm:$0xff]
    %v217 = vld [vmem:[#allocation6 + $0x20] sm:$0xff]
    %v218 = vld [vmem:[#allocation6 + $0x28] sm:$0xff]
    %v219 = vld [vmem:[#allocation6 + $0x30] sm:$0xff]
    %v220 = vld [vmem:[#allocation6 + $0x38] sm:$0xff]
    %v221 = vld [vmem:[#allocation6 + $0x40] sm:$0xff]
    %v222 = vld [vmem:[#allocation6 + $0x48] sm:$0xff]
    %v223 = vld [vmem:[#allocation6 + $0x50] sm:$0xff]
    %v224 = vld [vmem:[#allocation6 + $0x58] sm:$0xff]
    %v225 = vld [vmem:[#allocation6 + $0x60] sm:$0xff]
    %v226 = vld [vmem:[#allocation6 + $0x68] sm:$0xff]
    %v227 = vld [vmem:[#allocation6 + $0x70] sm:$0xff]
    %v228 = vld [vmem:[#allocation6 + $0x78] sm:$0xff]
    %v229 = vld [vmem:[#allocation6 + $0x80] sm:$0xff]
    %v230 = vld [vmem:[#allocation6 + $0x88] sm:$0xff]
    %v231 = vld [vmem:[#allocation6 + $0x90] sm:$0xff]
    %v232 = vld [vmem:[#allocation6 + $0x98] sm:$0xff]
    %v233 = vld [vmem:[#allocation6 + $0xa0] sm:$0xff]
    %v234 = vld [vmem:[#allocation6 + $0xa8] sm:$0xff]
    %v235 = vld [vmem:[#allocation6 + $0xb0] sm:$0xff]
    %v236 = vld [vmem:[#allocation6 + $0xb8] sm:$0xff]
    %v237 = vld [vmem:[#allocation6 + $0xc0] sm:$0xff]
    %v238 = vld [vmem:[#allocation6 + $0xc8] sm:$0xff]
    %v239 = vld [vmem:[#allocation6 + $0xd0] sm:$0xff]
    %v240 = vld [vmem:[#allocation6 + $0xd8] sm:$0xff]
    %v241 = vld [vmem:[#allocation6 + $0xe0] sm:$0xff]
    %v242 = vld [vmem:[#allocation6 + $0xe8] sm:$0xff]
    %v243 = vld [vmem:[#allocation6 + $0xf0] sm:$0xff]
    %v244 = vld [vmem:[#allocation6 + $0xf8] sm:$0xff]
    %v245 = vld [vmem:[#allocation6 + $0x100] sm:$0xff]
    %v246 = vld [vmem:[#allocation6 + $0x108] sm:$0xff]
    %v247 = vld [vmem:[#allocation6 + $0x110] sm:$0xff]
    %v248 = vld [vmem:[#allocation6 + $0x118] sm:$0xff]
    %v249 = vld [vmem:[#allocation6 + $0x120] sm:$0xff]
    %v250 = vld [vmem:[#allocation6 + $0x128] sm:$0xff]
    %v251 = vld [vmem:[#allocation6 + $0x130] sm:$0xff]
    %v252 = vld [vmem:[#allocation6 + $0x138] sm:$0xff]
    %v253 = vld [vmem:[#allocation6 + $0x140] sm:$0xff]
    %v254 = vld [vmem:[#allocation6 + $0x148] sm:$0xff]
    %v255 = vld [vmem:[#allocation6 + $0x150] sm:$0xff]
    %v256 = vld [vmem:[#allocation6 + $0x158] sm:$0xff]
    %v257 = vld [vmem:[#allocation6 + $0x160] sm:$0xff]
    %v258 = vld [vmem:[#allocation6 + $0x168] sm:$0xff]
    %v259 = vld [vmem:[#allocation6 + $0x170] sm:$0xff]
    %v260 = vld [vmem:[#allocation6 + $0x178] sm:$0xff]
    %v261 = vld [vmem:[#allocation6 + $0x180] sm:$0xff]
    %v262 = vld [vmem:[#allocation6 + $0x188] sm:$0xff]
    %v263 = vld [vmem:[#allocation6 + $0x190] sm:$0xff]
    %v264 = vld [vmem:[#allocation6 + $0x198] sm:$0xff]
    %v265 = vld [vmem:[#allocation6 + $0x1a0] sm:$0xff]
    %v266 = vld [vmem:[#allocation6 + $0x1a8] sm:$0xff]
    %v267 = vld [vmem:[#allocation6 + $0x1b0] sm:$0xff]
    %v268 = vld [vmem:[#allocation6 + $0x1b8] sm:$0xff]
    %v269 = vld [vmem:[#allocation6 + $0x1c0] sm:$0xff]
    %v270 = vld [vmem:[#allocation6 + $0x1c8] sm:$0xff]
    %v271 = vld [vmem:[#allocation6 + $0x1d0] sm:$0xff]
    %v272 = vld [vmem:[#allocation6 + $0x1d8] sm:$0xff]
    %v273 = vld [vmem:[#allocation6 + $0x1e0] sm:$0xff]
    %v274 = vld [vmem:[#allocation6 + $0x1e8] sm:$0xff]
    %v275 = vld [vmem:[#allocation6 + $0x1f0] sm:$0xff]
    %v276 = vld [vmem:[#allocation6 + $0x1f8] sm:$0xff]
    %277 = vmatpush.msra.mxu0 %v273
    %278 = vmatpush.msra.mxu0 %v269
    %279 = vmatpush.msra.mxu0 %v265
    %280 = vmatpush.msra.mxu0 %v261
    %281 = vmatpush.msra.mxu0 %v257
    %282 = vmatpush.msra.mxu0 %v253
    %283 = vmatpush.msra.mxu0 %v249
    %284 = vmatpush.msra.mxu0 %v245
    %285 = vmatpush.msra.mxu0 %v241
    %286 = vmatpush.msra.mxu0 %v237
    %287 = vmatpush.msra.mxu0 %v233
    %288 = vmatpush.msra.mxu0 %v229
    %289 = vmatpush.msra.mxu0 %v225
    %290 = vmatpush.msra.mxu0 %v221
    %291 = vmatpush.msra.mxu0 %v217
    %292 = vmatpush.msra.mxu0 %v213
    %293 = vmatmul.f32.gmra.mxu0 %v207
    %v294 = vpop.f32.mrf.mxu0
    %v295 = vadd.f32 0.0, %v294
    %296 = vdwg.mxu0
    %297 = vmatpush.msra.mxu0 %v274
    %298 = vmatpush.msra.mxu0 %v270
    %299 = vmatpush.msra.mxu0 %v266
    %300 = vmatpush.msra.mxu0 %v262
    %301 = vmatpush.msra.mxu0 %v258
    %302 = vmatpush.msra.mxu0 %v254
    %303 = vmatpush.msra.mxu0 %v250
    %304 = vmatpush.msra.mxu0 %v246
    %305 = vmatpush.msra.mxu0 %v242
    %306 = vmatpush.msra.mxu0 %v238
    %307 = vmatpush.msra.mxu0 %v234
    %308 = vmatpush.msra.mxu0 %v230
    %309 = vmatpush.msra.mxu0 %v226
    %310 = vmatpush.msra.mxu0 %v222
    %311 = vmatpush.msra.mxu0 %v218
    %312 = vmatpush.msra.mxu0 %v214
    %313 = vmatmul.f32.gmra.mxu0 %v207
    %v314 = vpop.f32.mrf.mxu0
    %v315 = vadd.f32 0.0, %v314
    %316 = vdwg.mxu0
    %317 = vmatpush.msra.mxu0 %v275
    %318 = vmatpush.msra.mxu0 %v271
    %319 = vmatpush.msra.mxu0 %v267
    %320 = vmatpush.msra.mxu0 %v263
    %321 = vmatpush.msra.mxu0 %v259
    %322 = vmatpush.msra.mxu0 %v255
    %323 = vmatpush.msra.mxu0 %v251
    %324 = vmatpush.msra.mxu0 %v247
    %325 = vmatpush.msra.mxu0 %v243
    %326 = vmatpush.msra.mxu0 %v239
    %327 = vmatpush.msra.mxu0 %v235
    %328 = vmatpush.msra.mxu0 %v231
    %329 = vmatpush.msra.mxu0 %v227
    %330 = vmatpush.msra.mxu0 %v223
    %331 = vmatpush.msra.mxu0 %v219
    %332 = vmatpush.msra.mxu0 %v215
    %333 = vmatmul.f32.gmra.mxu0 %v207
    %v334 = vpop.f32.mrf.mxu0
    %v335 = vadd.f32 0.0, %v334
    %336 = vdwg.mxu0
    %337 = vmatpush.msra.mxu0 %v276
    %338 = vmatpush.msra.mxu0 %v272
    %339 = vmatpush.msra.mxu0 %v268
    %340 = vmatpush.msra.mxu0 %v264
    %341 = vmatpush.msra.mxu0 %v260
    %342 = vmatpush.msra.mxu0 %v256
    %343 = vmatpush.msra.mxu0 %v252
    %344 = vmatpush.msra.mxu0 %v248
    %345 = vmatpush.msra.mxu0 %v244
    %346 = vmatpush.msra.mxu0 %v240
    %347 = vmatpush.msra.mxu0 %v236
    %348 = vmatpush.msra.mxu0 %v232
    %349 = vmatpush.msra.mxu0 %v228
    %350 = vmatpush.msra.mxu0 %v224
    %351 = vmatpush.msra.mxu0 %v220
    %352 = vmatpush.msra.mxu0 %v216
    %353 = vmatmul.f32.gmra.mxu0 %v207
    %v354 = vpop.f32.mrf.mxu0
    %v355 = vadd.f32 0.0, %v354
    %356 = vdwg.mxu0
    %v357 = vadd.f32 %v209, %v295
    %v358 = vadd.f32 %v210, %v315
    %v359 = vadd.f32 %v211, %v335
    %v360 = vadd.f32 %v212, %v355
    %v361 = vxor.u32 %v357, 2147483648
    %v362 = vmul.f32 %v361, 1.442695
    %v363 = vpow.pop %v362
    %v364 = vadd.f32 %v363, 1.0
    %v365 = vrcp.pop %v364
    %v366 = vmul.f32 %v364, %v365
    %v367 = vsub.f32 1.0, %v366
    %v368 = vmul.f32 %v365, %v367
    %v369 = vadd.f32 %v365, %v368
    %vm370 = vweird.f32 %v364
    %vm371 = vweird.f32 %v365
    %vm372 = vmor %vm370, %vm371
    %v373 = vsel %vm372, %v365, %v369
    %v374 = vand.u32 2147483647, %v364
    %vm375 = vcmp.eq.f32.partialorder %v374, 8.507059e+37
    %v376 = vand.u32 %v364, 2147483648
    %v377 = vor.u32 1.1754944e-38, %v376
    %v378 = vsel %vm375, %v377, %v373
    %v379 = vmul.f32 1.0, %v378
    %v380 = vxor.u32 %v358, 2147483648
    %v381 = vmul.f32 %v380, 1.442695
    %v382 = vpow.pop %v381
    %v383 = vadd.f32 %v382, 1.0
    %v384 = vrcp.pop %v383
    %v385 = vmul.f32 %v383, %v384
    %v386 = vsub.f32 1.0, %v385
    %v387 = vmul.f32 %v384, %v386
    %v388 = vadd.f32 %v384, %v387
    %vm389 = vweird.f32 %v383
    %vm390 = vweird.f32 %v384
    %vm391 = vmor %vm389, %vm390
    %v392 = vsel %vm391, %v384, %v388
    %v393 = vand.u32 2147483647, %v383
    %vm394 = vcmp.eq.f32.partialorder %v393, 8.507059e+37
    %v395 = vand.u32 %v383, 2147483648
    %v396 = vor.u32 1.1754944e-38, %v395
    %v397 = vsel %vm394, %v396, %v392
    %v398 = vmul.f32 1.0, %v397
    %v399 = vtanh.pop %v359
    %v400 = vxor.u32 %v360, 2147483648
    %v401 = vmul.f32 %v400, 1.442695
    %v402 = vpow.pop %v401
    %v403 = vadd.f32 %v402, 1.0
    %v404 = vrcp.pop %v403
    %v405 = vmul.f32 %v403, %v404
    %v406 = vsub.f32 1.0, %v405
    %v407 = vmul.f32 %v404, %v406
    %v408 = vadd.f32 %v404, %v407
    %vm409 = vweird.f32 %v403
    %vm410 = vweird.f32 %v404
    %vm411 = vmor %vm409, %vm410
    %v412 = vsel %vm411, %v404, %v408
    %v413 = vand.u32 2147483647, %v403
    %vm414 = vcmp.eq.f32.partialorder %v413, 8.507059e+37
    %v415 = vand.u32 %v403, 2147483648
    %v416 = vor.u32 1.1754944e-38, %v415
    %v417 = vsel %vm414, %v416, %v412
    %v418 = vmul.f32 1.0, %v417
    %v419 = vmul.f32 %v398, %v208
    %v420 = vmul.f32 %v379, %v399
    %v421 = vadd.f32 %v419, %v420
    %422 = vst [vmem:[#allocation4] sm:$0xff] %v421
    %v423 = vtanh.pop %v421
    %v424 = vmul.f32 %v418, %v423
    %425 = vst [vmem:[#allocation3] sm:$0xff] %v424
    %v426 = vld [vmem:[#allocation3] sm:$0xff]
    %v427 = vld [vmem:[#allocation4] sm:$0xff]
    %s428 = scalar_lea.vmem [#allocation2], 32
    %v429 = vld [vmem:[%s428] sm:$0xff]
    %v430 = vld [vmem:[%s428 + $0x8] sm:$0xff]
    %v431 = vld [vmem:[%s428 + $0x10] sm:$0xff]
    %v432 = vld [vmem:[%s428 + $0x18] sm:$0xff]
    %v433 = vld [vmem:[#allocation6] sm:$0xff]
    %v434 = vld [vmem:[#allocation6 + $0x8] sm:$0xff]
    %v435 = vld [vmem:[#allocation6 + $0x10] sm:$0xff]
    %v436 = vld [vmem:[#allocation6 + $0x18] sm:$0xff]
    %v437 = vld [vmem:[#allocation6 + $0x20] sm:$0xff]
    %v438 = vld [vmem:[#allocation6 + $0x28] sm:$0xff]
    %v439 = vld [vmem:[#allocation6 + $0x30] sm:$0xff]
    %v440 = vld [vmem:[#allocation6 + $0x38] sm:$0xff]
    %v441 = vld [vmem:[#allocation6 + $0x40] sm:$0xff]
    %v442 = vld [vmem:[#allocation6 + $0x48] sm:$0xff]
    %v443 = vld [vmem:[#allocation6 + $0x50] sm:$0xff]
    %v444 = vld [vmem:[#allocation6 + $0x58] sm:$0xff]
    %v445 = vld [vmem:[#allocation6 + $0x60] sm:$0xff]
    %v446 = vld [vmem:[#allocation6 + $0x68] sm:$0xff]
    %v447 = vld [vmem:[#allocation6 + $0x70] sm:$0xff]
    %v448 = vld [vmem:[#allocation6 + $0x78] sm:$0xff]
    %v449 = vld [vmem:[#allocation6 + $0x80] sm:$0xff]
    %v450 = vld [vmem:[#allocation6 + $0x88] sm:$0xff]
    %v451 = vld [vmem:[#allocation6 + $0x90] sm:$0xff]
    %v452 = vld [vmem:[#allocation6 + $0x98] sm:$0xff]
    %v453 = vld [vmem:[#allocation6 + $0xa0] sm:$0xff]
    %v454 = vld [vmem:[#allocation6 + $0xa8] sm:$0xff]
    %v455 = vld [vmem:[#allocation6 + $0xb0] sm:$0xff]
    %v456 = vld [vmem:[#allocation6 + $0xb8] sm:$0xff]
    %v457 = vld [vmem:[#allocation6 + $0xc0] sm:$0xff]
    %v458 = vld [vmem:[#allocation6 + $0xc8] sm:$0xff]
    %v459 = vld [vmem:[#allocation6 + $0xd0] sm:$0xff]
    %v460 = vld [vmem:[#allocation6 + $0xd8] sm:$0xff]
    %v461 = vld [vmem:[#allocation6 + $0xe0] sm:$0xff]
    %v462 = vld [vmem:[#allocation6 + $0xe8] sm:$0xff]
    %v463 = vld [vmem:[#allocation6 + $0xf0] sm:$0xff]
    %v464 = vld [vmem:[#allocation6 + $0xf8] sm:$0xff]
    %v465 = vld [vmem:[#allocation6 + $0x100] sm:$0xff]
    %v466 = vld [vmem:[#allocation6 + $0x108] sm:$0xff]
    %v467 = vld [vmem:[#allocation6 + $0x110] sm:$0xff]
    %v468 = vld [vmem:[#allocation6 + $0x118] sm:$0xff]
    %v469 = vld [vmem:[#allocation6 + $0x120] sm:$0xff]
    %v470 = vld [vmem:[#allocation6 + $0x128] sm:$0xff]
    %v471 = vld [vmem:[#allocation6 + $0x130] sm:$0xff]
    %v472 = vld [vmem:[#allocation6 + $0x138] sm:$0xff]
    %v473 = vld [vmem:[#allocation6 + $0x140] sm:$0xff]
    %v474 = vld [vmem:[#allocation6 + $0x148] sm:$0xff]
    %v475 = vld [vmem:[#allocation6 + $0x150] sm:$0xff]
    %v476 = vld [vmem:[#allocation6 + $0x158] sm:$0xff]
    %v477 = vld [vmem:[#allocation6 + $0x160] sm:$0xff]
    %v478 = vld [vmem:[#allocation6 + $0x168] sm:$0xff]
    %v479 = vld [vmem:[#allocation6 + $0x170] sm:$0xff]
    %v480 = vld [vmem:[#allocation6 + $0x178] sm:$0xff]
    %v481 = vld [vmem:[#allocation6 + $0x180] sm:$0xff]
    %v482 = vld [vmem:[#allocation6 + $0x188] sm:$0xff]
    %v483 = vld [vmem:[#allocation6 + $0x190] sm:$0xff]
    %v484 = vld [vmem:[#allocation6 + $0x198] sm:$0xff]
    %v485 = vld [vmem:[#allocation6 + $0x1a0] sm:$0xff]
    %v486 = vld [vmem:[#allocation6 + $0x1a8] sm:$0xff]
    %v487 = vld [vmem:[#allocation6 + $0x1b0] sm:$0xff]
    %v488 = vld [vmem:[#allocation6 + $0x1b8] sm:$0xff]
    %v489 = vld [vmem:[#allocation6 + $0x1c0] sm:$0xff]
    %v490 = vld [vmem:[#allocation6 + $0x1c8] sm:$0xff]
    %v491 = vld [vmem:[#allocation6 + $0x1d0] sm:$0xff]
    %v492 = vld [vmem:[#allocation6 + $0x1d8] sm:$0xff]
    %v493 = vld [vmem:[#allocation6 + $0x1e0] sm:$0xff]
    %v494 = vld [vmem:[#allocation6 + $0x1e8] sm:$0xff]
    %v495 = vld [vmem:[#allocation6 + $0x1f0] sm:$0xff]
    %v496 = vld [vmem:[#allocation6 + $0x1f8] sm:$0xff]
    %497 = vmatpush.msra.mxu0 %v493
    %498 = vmatpush.msra.mxu0 %v489
    %499 = vmatpush.msra.mxu0 %v485
    %500 = vmatpush.msra.mxu0 %v481
    %501 = vmatpush.msra.mxu0 %v477
    %502 = vmatpush.msra.mxu0 %v473
    %503 = vmatpush.msra.mxu0 %v469
    %504 = vmatpush.msra.mxu0 %v465
    %505 = vmatpush.msra.mxu0 %v461
    %506 = vmatpush.msra.mxu0 %v457
    %507 = vmatpush.msra.mxu0 %v453
    %508 = vmatpush.msra.mxu0 %v449
    %509 = vmatpush.msra.mxu0 %v445
    %510 = vmatpush.msra.mxu0 %v441
    %511 = vmatpush.msra.mxu0 %v437
    %512 = vmatpush.msra.mxu0 %v433
    %513 = vmatmul.f32.gmra.mxu0 %v426
    %v514 = vpop.f32.mrf.mxu0
    %v515 = vadd.f32 0.0, %v514
    %516 = vdwg.mxu0
    %517 = vmatpush.msra.mxu0 %v494
    %518 = vmatpush.msra.mxu0 %v490
    %519 = vmatpush.msra.mxu0 %v486
    %520 = vmatpush.msra.mxu0 %v482
    %521 = vmatpush.msra.mxu0 %v478
    %522 = vmatpush.msra.mxu0 %v474
    %523 = vmatpush.msra.mxu0 %v470
    %524 = vmatpush.msra.mxu0 %v466
    %525 = vmatpush.msra.mxu0 %v462
    %526 = vmatpush.msra.mxu0 %v458
    %527 = vmatpush.msra.mxu0 %v454
    %528 = vmatpush.msra.mxu0 %v450
    %529 = vmatpush.msra.mxu0 %v446
    %530 = vmatpush.msra.mxu0 %v442
    %531 = vmatpush.msra.mxu0 %v438
    %532 = vmatpush.msra.mxu0 %v434
    %533 = vmatmul.f32.gmra.mxu0 %v426
    %v534 = vpop.f32.mrf.mxu0
    %v535 = vadd.f32 0.0, %v534
    %536 = vdwg.mxu0
    %537 = vmatpush.msra.mxu0 %v495
    %538 = vmatpush.msra.mxu0 %v491
    %539 = vmatpush.msra.mxu0 %v487
    %540 = vmatpush.msra.mxu0 %v483
    %541 = vmatpush.msra.mxu0 %v479
    %542 = vmatpush.msra.mxu0 %v475
    %543 = vmatpush.msra.mxu0 %v471
    %544 = vmatpush.msra.mxu0 %v467
    %545 = vmatpush.msra.mxu0 %v463
    %546 = vmatpush.msra.mxu0 %v459
    %547 = vmatpush.msra.mxu0 %v455
    %548 = vmatpush.msra.mxu0 %v451
    %549 = vmatpush.msra.mxu0 %v447
    %550 = vmatpush.msra.mxu0 %v443
    %551 = vmatpush.msra.mxu0 %v439
    %552 = vmatpush.msra.mxu0 %v435
    %553 = vmatmul.f32.gmra.mxu0 %v426
    %v554 = vpop.f32.mrf.mxu0
    %v555 = vadd.f32 0.0, %v554
    %556 = vdwg.mxu0
    %557 = vmatpush.msra.mxu0 %v496
    %558 = vmatpush.msra.mxu0 %v492
    %559 = vmatpush.msra.mxu0 %v488
    %560 = vmatpush.msra.mxu0 %v484
    %561 = vmatpush.msra.mxu0 %v480
    %562 = vmatpush.msra.mxu0 %v476
    %563 = vmatpush.msra.mxu0 %v472
    %564 = vmatpush.msra.mxu0 %v468
    %565 = vmatpush.msra.mxu0 %v464
    %566 = vmatpush.msra.mxu0 %v460
    %567 = vmatpush.msra.mxu0 %v456
    %568 = vmatpush.msra.mxu0 %v452
    %569 = vmatpush.msra.mxu0 %v448
    %570 = vmatpush.msra.mxu0 %v444
    %571 = vmatpush.msra.mxu0 %v440
    %572 = vmatpush.msra.mxu0 %v436
    %573 = vmatmul.f32.gmra.mxu0 %v426
    %v574 = vpop.f32.mrf.mxu0
    %v575 = vadd.f32 0.0, %v574
    %576 = vdwg.mxu0
    %v577 = vadd.f32 %v429, %v515
    %v578 = vadd.f32 %v430, %v535
    %v579 = vadd.f32 %v431, %v555
    %v580 = vadd.f32 %v432, %v575
    %v581 = vxor.u32 %v577, 2147483648
    %v582 = vmul.f32 %v581, 1.442695
    %v583 = vpow.pop %v582
    %v584 = vadd.f32 %v583, 1.0
    %v585 = vrcp.pop %v584
    %v586 = vmul.f32 %v584, %v585
    %v587 = vsub.f32 1.0, %v586
    %v588 = vmul.f32 %v585, %v587
    %v589 = vadd.f32 %v585, %v588
    %vm590 = vweird.f32 %v584
    %vm591 = vweird.f32 %v585
    %vm592 = vmor %vm590, %vm591
    %v593 = vsel %vm592, %v585, %v589
    %v594 = vand.u32 2147483647, %v584
    %vm595 = vcmp.eq.f32.partialorder %v594, 8.507059e+37
    %v596 = vand.u32 %v584, 2147483648
    %v597 = vor.u32 1.1754944e-38, %v596
    %v598 = vsel %vm595, %v597, %v593
    %v599 = vmul.f32 1.0, %v598
    %v600 = vxor.u32 %v578, 2147483648
    %v601 = vmul.f32 %v600, 1.442695
    %v602 = vpow.pop %v601
    %v603 = vadd.f32 %v602, 1.0
    %v604 = vrcp.pop %v603
    %v605 = vmul.f32 %v603, %v604
    %v606 = vsub.f32 1.0, %v605
    %v607 = vmul.f32 %v604, %v606
    %v608 = vadd.f32 %v604, %v607
    %vm609 = vweird.f32 %v603
    %vm610 = vweird.f32 %v604
    %vm611 = vmor %vm609, %vm610
    %v612 = vsel %vm611, %v604, %v608
    %v613 = vand.u32 2147483647, %v603
    %vm614 = vcmp.eq.f32.partialorder %v613, 8.507059e+37
    %v615 = vand.u32 %v603, 2147483648
    %v616 = vor.u32 1.1754944e-38, %v615
    %v617 = vsel %vm614, %v616, %v612
    %v618 = vmul.f32 1.0, %v617
    %v619 = vtanh.pop %v579
    %v620 = vxor.u32 %v580, 2147483648
    %v621 = vmul.f32 %v620, 1.442695
    %v622 = vpow.pop %v621
    %v623 = vadd.f32 %v622, 1.0
    %v624 = vrcp.pop %v623
    %v625 = vmul.f32 %v623, %v624
    %v626 = vsub.f32 1.0, %v625
    %v627 = vmul.f32 %v624, %v626
    %v628 = vadd.f32 %v624, %v627
    %vm629 = vweird.f32 %v623
    %vm630 = vweird.f32 %v624
    %vm631 = vmor %vm629, %vm630
    %v632 = vsel %vm631, %v624, %v628
    %v633 = vand.u32 2147483647, %v623
    %vm634 = vcmp.eq.f32.partialorder %v633, 8.507059e+37
    %v635 = vand.u32 %v623, 2147483648
    %v636 = vor.u32 1.1754944e-38, %v635
    %v637 = vsel %vm634, %v636, %v632
    %v638 = vmul.f32 1.0, %v637
    %v639 = vmul.f32 %v618, %v427
    %v640 = vmul.f32 %v599, %v619
    %v641 = vadd.f32 %v639, %v640
    %642 = vst [vmem:[#allocation4] sm:$0xff] %v641
    %v643 = vtanh.pop %v641
    %v644 = vmul.f32 %v638, %v643
    %645 = vst [vmem:[#allocation3] sm:$0xff] %v644
    %v646 = vld [vmem:[#allocation3] sm:$0xff]
    %v647 = vld [vmem:[#allocation4] sm:$0xff]
    %s648 = scalar_lea.vmem [#allocation2], 64
    %v649 = vld [vmem:[%s648] sm:$0xff]
    %v650 = vld [vmem:[%s648 + $0x8] sm:$0xff]
    %v651 = vld [vmem:[%s648 + $0x10] sm:$0xff]
    %v652 = vld [vmem:[%s648 + $0x18] sm:$0xff]
    %v653 = vld [vmem:[#allocation6] sm:$0xff]
    %v654 = vld [vmem:[#allocation6 + $0x8] sm:$0xff]
    %v655 = vld [vmem:[#allocation6 + $0x10] sm:$0xff]
    %v656 = vld [vmem:[#allocation6 + $0x18] sm:$0xff]
    %v657 = vld [vmem:[#allocation6 + $0x20] sm:$0xff]
    %v658 = vld [vmem:[#allocation6 + $0x28] sm:$0xff]
    %v659 = vld [vmem:[#allocation6 + $0x30] sm:$0xff]
    %v660 = vld [vmem:[#allocation6 + $0x38] sm:$0xff]
    %v661 = vld [vmem:[#allocation6 + $0x40] sm:$0xff]
    %v662 = vld [vmem:[#allocation6 + $0x48] sm:$0xff]
    %v663 = vld [vmem:[#allocation6 + $0x50] sm:$0xff]
    %v664 = vld [vmem:[#allocation6 + $0x58] sm:$0xff]
    %v665 = vld [vmem:[#allocation6 + $0x60] sm:$0xff]
    %v666 = vld [vmem:[#allocation6 + $0x68] sm:$0xff]
    %v667 = vld [vmem:[#allocation6 + $0x70] sm:$0xff]
    %v668 = vld [vmem:[#allocation6 + $0x78] sm:$0xff]
    %v669 = vld [vmem:[#allocation6 + $0x80] sm:$0xff]
    %v670 = vld [vmem:[#allocation6 + $0x88] sm:$0xff]
    %v671 = vld [vmem:[#allocation6 + $0x90] sm:$0xff]
    %v672 = vld [vmem:[#allocation6 + $0x98] sm:$0xff]
    %v673 = vld [vmem:[#allocation6 + $0xa0] sm:$0xff]
    %v674 = vld [vmem:[#allocation6 + $0xa8] sm:$0xff]
    %v675 = vld [vmem:[#allocation6 + $0xb0] sm:$0xff]
    %v676 = vld [vmem:[#allocation6 + $0xb8] sm:$0xff]
    %v677 = vld [vmem:[#allocation6 + $0xc0] sm:$0xff]
    %v678 = vld [vmem:[#allocation6 + $0xc8] sm:$0xff]
    %v679 = vld [vmem:[#allocation6 + $0xd0] sm:$0xff]
    %v680 = vld [vmem:[#allocation6 + $0xd8] sm:$0xff]
    %v681 = vld [vmem:[#allocation6 + $0xe0] sm:$0xff]
    %v682 = vld [vmem:[#allocation6 + $0xe8] sm:$0xff]
    %v683 = vld [vmem:[#allocation6 + $0xf0] sm:$0xff]
    %v684 = vld [vmem:[#allocation6 + $0xf8] sm:$0xff]
    %v685 = vld [vmem:[#allocation6 + $0x100] sm:$0xff]
    %v686 = vld [vmem:[#allocation6 + $0x108] sm:$0xff]
    %v687 = vld [vmem:[#allocation6 + $0x110] sm:$0xff]
    %v688 = vld [vmem:[#allocation6 + $0x118] sm:$0xff]
    %v689 = vld [vmem:[#allocation6 + $0x120] sm:$0xff]
    %v690 = vld [vmem:[#allocation6 + $0x128] sm:$0xff]
    %v691 = vld [vmem:[#allocation6 + $0x130] sm:$0xff]
    %v692 = vld [vmem:[#allocation6 + $0x138] sm:$0xff]
    %v693 = vld [vmem:[#allocation6 + $0x140] sm:$0xff]
    %v694 = vld [vmem:[#allocation6 + $0x148] sm:$0xff]
    %v695 = vld [vmem:[#allocation6 + $0x150] sm:$0xff]
    %v696 = vld [vmem:[#allocation6 + $0x158] sm:$0xff]
    %v697 = vld [vmem:[#allocation6 + $0x160] sm:$0xff]
    %v698 = vld [vmem:[#allocation6 + $0x168] sm:$0xff]
    %v699 = vld [vmem:[#allocation6 + $0x170] sm:$0xff]
    %v700 = vld [vmem:[#allocation6 + $0x178] sm:$0xff]
    %v701 = vld [vmem:[#allocation6 + $0x180] sm:$0xff]
    %v702 = vld [vmem:[#allocation6 + $0x188] sm:$0xff]
    %v703 = vld [vmem:[#allocation6 + $0x190] sm:$0xff]
    %v704 = vld [vmem:[#allocation6 + $0x198] sm:$0xff]
    %v705 = vld [vmem:[#allocation6 + $0x1a0] sm:$0xff]
    %v706 = vld [vmem:[#allocation6 + $0x1a8] sm:$0xff]
    %v707 = vld [vmem:[#allocation6 + $0x1b0] sm:$0xff]
    %v708 = vld [vmem:[#allocation6 + $0x1b8] sm:$0xff]
    %v709 = vld [vmem:[#allocation6 + $0x1c0] sm:$0xff]
    %v710 = vld [vmem:[#allocation6 + $0x1c8] sm:$0xff]
    %v711 = vld [vmem:[#allocation6 + $0x1d0] sm:$0xff]
    %v712 = vld [vmem:[#allocation6 + $0x1d8] sm:$0xff]
    %v713 = vld [vmem:[#allocation6 + $0x1e0] sm:$0xff]
    %v714 = vld [vmem:[#allocation6 + $0x1e8] sm:$0xff]
    %v715 = vld [vmem:[#allocation6 + $0x1f0] sm:$0xff]
    %v716 = vld [vmem:[#allocation6 + $0x1f8] sm:$0xff]
    %717 = vmatpush.msra.mxu0 %v713
    %718 = vmatpush.msra.mxu0 %v709
    %719 = vmatpush.msra.mxu0 %v705
    %720 = vmatpush.msra.mxu0 %v701
    %721 = vmatpush.msra.mxu0 %v697
    %722 = vmatpush.msra.mxu0 %v693
    %723 = vmatpush.msra.mxu0 %v689
    %724 = vmatpush.msra.mxu0 %v685
    %725 = vmatpush.msra.mxu0 %v681
    %726 = vmatpush.msra.mxu0 %v677
    %727 = vmatpush.msra.mxu0 %v673
    %728 = vmatpush.msra.mxu0 %v669
    %729 = vmatpush.msra.mxu0 %v665
    %730 = vmatpush.msra.mxu0 %v661
    %731 = vmatpush.msra.mxu0 %v657
    %732 = vmatpush.msra.mxu0 %v653
    %733 = vmatmul.f32.gmra.mxu0 %v646
    %v734 = vpop.f32.mrf.mxu0
    %v735 = vadd.f32 0.0, %v734
    %736 = vdwg.mxu0
    %737 = vmatpush.msra.mxu0 %v714
    %738 = vmatpush.msra.mxu0 %v710
    %739 = vmatpush.msra.mxu0 %v706
    %740 = vmatpush.msra.mxu0 %v702
    %741 = vmatpush.msra.mxu0 %v698
    %742 = vmatpush.msra.mxu0 %v694
    %743 = vmatpush.msra.mxu0 %v690
    %744 = vmatpush.msra.mxu0 %v686
    %745 = vmatpush.msra.mxu0 %v682
    %746 = vmatpush.msra.mxu0 %v678
    %747 = vmatpush.msra.mxu0 %v674
    %748 = vmatpush.msra.mxu0 %v670
    %749 = vmatpush.msra.mxu0 %v666
    %750 = vmatpush.msra.mxu0 %v662
    %751 = vmatpush.msra.mxu0 %v658
    %752 = vmatpush.msra.mxu0 %v654
    %753 = vmatmul.f32.gmra.mxu0 %v646
    %v754 = vpop.f32.mrf.mxu0
    %v755 = vadd.f32 0.0, %v754
    %756 = vdwg.mxu0
    %757 = vmatpush.msra.mxu0 %v715
    %758 = vmatpush.msra.mxu0 %v711
    %759 = vmatpush.msra.mxu0 %v707
    %760 = vmatpush.msra.mxu0 %v703
    %761 = vmatpush.msra.mxu0 %v699
    %762 = vmatpush.msra.mxu0 %v695
    %763 = vmatpush.msra.mxu0 %v691
    %764 = vmatpush.msra.mxu0 %v687
    %765 = vmatpush.msra.mxu0 %v683
    %766 = vmatpush.msra.mxu0 %v679
    %767 = vmatpush.msra.mxu0 %v675
    %768 = vmatpush.msra.mxu0 %v671
    %769 = vmatpush.msra.mxu0 %v667
    %770 = vmatpush.msra.mxu0 %v663
    %771 = vmatpush.msra.mxu0 %v659
    %772 = vmatpush.msra.mxu0 %v655
    %773 = vmatmul.f32.gmra.mxu0 %v646
    %v774 = vpop.f32.mrf.mxu0
    %v775 = vadd.f32 0.0, %v774
    %776 = vdwg.mxu0
    %777 = vmatpush.msra.mxu0 %v716
    %778 = vmatpush.msra.mxu0 %v712
    %779 = vmatpush.msra.mxu0 %v708
    %780 = vmatpush.msra.mxu0 %v704
    %781 = vmatpush.msra.mxu0 %v700
    %782 = vmatpush.msra.mxu0 %v696
    %783 = vmatpush.msra.mxu0 %v692
    %784 = vmatpush.msra.mxu0 %v688
    %785 = vmatpush.msra.mxu0 %v684
    %786 = vmatpush.msra.mxu0 %v680
    %787 = vmatpush.msra.mxu0 %v676
    %788 = vmatpush.msra.mxu0 %v672
    %789 = vmatpush.msra.mxu0 %v668
    %790 = vmatpush.msra.mxu0 %v664
    %791 = vmatpush.msra.mxu0 %v660
    %792 = vmatpush.msra.mxu0 %v656
    %793 = vmatmul.f32.gmra.mxu0 %v646
    %v794 = vpop.f32.mrf.mxu0
    %v795 = vadd.f32 0.0, %v794
    %796 = vdwg.mxu0
    %v797 = vadd.f32 %v649, %v735
    %v798 = vadd.f32 %v650, %v755
    %v799 = vadd.f32 %v651, %v775
    %v800 = vadd.f32 %v652, %v795
    %v801 = vxor.u32 %v797, 2147483648
    %v802 = vmul.f32 %v801, 1.442695
    %v803 = vpow.pop %v802
    %v804 = vadd.f32 %v803, 1.0
    %v805 = vrcp.pop %v804
    %v806 = vmul.f32 %v804, %v805
    %v807 = vsub.f32 1.0, %v806
    %v808 = vmul.f32 %v805, %v807
    %v809 = vadd.f32 %v805, %v808
    %vm810 = vweird.f32 %v804
    %vm811 = vweird.f32 %v805
    %vm812 = vmor %vm810, %vm811
    %v813 = vsel %vm812, %v805, %v809
    %v814 = vand.u32 2147483647, %v804
    %vm815 = vcmp.eq.f32.partialorder %v814, 8.507059e+37
    %v816 = vand.u32 %v804, 2147483648
    %v817 = vor.u32 1.1754944e-38, %v816
    %v818 = vsel %vm815, %v817, %v813
    %v819 = vmul.f32 1.0, %v818
    %v820 = vxor.u32 %v798, 2147483648
    %v821 = vmul.f32 %v820, 1.442695
    %v822 = vpow.pop %v821
    %v823 = vadd.f32 %v822, 1.0
    %v824 = vrcp.pop %v823
    %v825 = vmul.f32 %v823, %v824
    %v826 = vsub.f32 1.0, %v825
    %v827 = vmul.f32 %v824, %v826
    %v828 = vadd.f32 %v824, %v827
    %vm829 = vweird.f32 %v823
    %vm830 = vweird.f32 %v824
    %vm831 = vmor %vm829, %vm830
    %v832 = vsel %vm831, %v824, %v828
    %v833 = vand.u32 2147483647, %v823
    %vm834 = vcmp.eq.f32.partialorder %v833, 8.507059e+37
    %v835 = vand.u32 %v823, 2147483648
    %v836 = vor.u32 1.1754944e-38, %v835
    %v837 = vsel %vm834, %v836, %v832
    %v838 = vmul.f32 1.0, %v837
    %v839 = vtanh.pop %v799
    %v840 = vxor.u32 %v800, 2147483648
    %v841 = vmul.f32 %v840, 1.442695
    %v842 = vpow.pop %v841
    %v843 = vadd.f32 %v842, 1.0
    %v844 = vrcp.pop %v843
    %v845 = vmul.f32 %v843, %v844
    %v846 = vsub.f32 1.0, %v845
    %v847 = vmul.f32 %v844, %v846
    %v848 = vadd.f32 %v844, %v847
    %vm849 = vweird.f32 %v843
    %vm850 = vweird.f32 %v844
    %vm851 = vmor %vm849, %vm850
    %v852 = vsel %vm851, %v844, %v848
    %v853 = vand.u32 2147483647, %v843
    %vm854 = vcmp.eq.f32.partialorder %v853, 8.507059e+37
    %v855 = vand.u32 %v843, 2147483648
    %v856 = vor.u32 1.1754944e-38, %v855
    %v857 = vsel %vm854, %v856, %v852
    %v858 = vmul.f32 1.0, %v857
    %v859 = vmul.f32 %v838, %v647
    %v860 = vmul.f32 %v819, %v839
    %v861 = vadd.f32 %v859, %v860
    %862 = vst [vmem:[#allocation4] sm:$0xff] %v861
    %v863 = vtanh.pop %v861
    %v864 = vmul.f32 %v858, %v863
    %865 = vst [vmem:[#allocation3] sm:$0xff] %v864
    %v866 = vld [vmem:[#allocation3] sm:$0xff]
    %v867 = vld [vmem:[#allocation4] sm:$0xff]
    %s868 = scalar_lea.vmem [#allocation2], 96
    %v869 = vld [vmem:[%s868] sm:$0xff]
    %v870 = vld [vmem:[%s868 + $0x8] sm:$0xff]
    %v871 = vld [vmem:[%s868 + $0x10] sm:$0xff]
    %v872 = vld [vmem:[%s868 + $0x18] sm:$0xff]
    %v873 = vld [vmem:[#allocation6] sm:$0xff]
    %v874 = vld [vmem:[#allocation6 + $0x8] sm:$0xff]
    %v875 = vld [vmem:[#allocation6 + $0x10] sm:$0xff]
    %v876 = vld [vmem:[#allocation6 + $0x18] sm:$0xff]
    %v877 = vld [vmem:[#allocation6 + $0x20] sm:$0xff]
    %v878 = vld [vmem:[#allocation6 + $0x28] sm:$0xff]
    %v879 = vld [vmem:[#allocation6 + $0x30] sm:$0xff]
    %v880 = vld [vmem:[#allocation6 + $0x38] sm:$0xff]
    %v881 = vld [vmem:[#allocation6 + $0x40] sm:$0xff]
    %v882 = vld [vmem:[#allocation6 + $0x48] sm:$0xff]
    %v883 = vld [vmem:[#allocation6 + $0x50] sm:$0xff]
    %v884 = vld [vmem:[#allocation6 + $0x58] sm:$0xff]
    %v885 = vld [vmem:[#allocation6 + $0x60] sm:$0xff]
    %v886 = vld [vmem:[#allocation6 + $0x68] sm:$0xff]
    %v887 = vld [vmem:[#allocation6 + $0x70] sm:$0xff]
    %v888 = vld [vmem:[#allocation6 + $0x78] sm:$0xff]
    %v889 = vld [vmem:[#allocation6 + $0x80] sm:$0xff]
    %v890 = vld [vmem:[#allocation6 + $0x88] sm:$0xff]
    %v891 = vld [vmem:[#allocation6 + $0x90] sm:$0xff]
    %v892 = vld [vmem:[#allocation6 + $0x98] sm:$0xff]
    %v893 = vld [vmem:[#allocation6 + $0xa0] sm:$0xff]
    %v894 = vld [vmem:[#allocation6 + $0xa8] sm:$0xff]
    %v895 = vld [vmem:[#allocation6 + $0xb0] sm:$0xff]
    %v896 = vld [vmem:[#allocation6 + $0xb8] sm:$0xff]
    %v897 = vld [vmem:[#allocation6 + $0xc0] sm:$0xff]
    %v898 = vld [vmem:[#allocation6 + $0xc8] sm:$0xff]
    %v899 = vld [vmem:[#allocation6 + $0xd0] sm:$0xff]
    %v900 = vld [vmem:[#allocation6 + $0xd8] sm:$0xff]
    %v901 = vld [vmem:[#allocation6 + $0xe0] sm:$0xff]
    %v902 = vld [vmem:[#allocation6 + $0xe8] sm:$0xff]
    %v903 = vld [vmem:[#allocation6 + $0xf0] sm:$0xff]
    %v904 = vld [vmem:[#allocation6 + $0xf8] sm:$0xff]
    %v905 = vld [vmem:[#allocation6 + $0x100] sm:$0xff]
    %v906 = vld [vmem:[#allocation6 + $0x108] sm:$0xff]
    %v907 = vld [vmem:[#allocation6 + $0x110] sm:$0xff]
    %v908 = vld [vmem:[#allocation6 + $0x118] sm:$0xff]
    %v909 = vld [vmem:[#allocation6 + $0x120] sm:$0xff]
    %v910 = vld [vmem:[#allocation6 + $0x128] sm:$0xff]
    %v911 = vld [vmem:[#allocation6 + $0x130] sm:$0xff]
    %v912 = vld [vmem:[#allocation6 + $0x138] sm:$0xff]
    %v913 = vld [vmem:[#allocation6 + $0x140] sm:$0xff]
    %v914 = vld [vmem:[#allocation6 + $0x148] sm:$0xff]
    %v915 = vld [vmem:[#allocation6 + $0x150] sm:$0xff]
    %v916 = vld [vmem:[#allocation6 + $0x158] sm:$0xff]
    %v917 = vld [vmem:[#allocation6 + $0x160] sm:$0xff]
    %v918 = vld [vmem:[#allocation6 + $0x168] sm:$0xff]
    %v919 = vld [vmem:[#allocation6 + $0x170] sm:$0xff]
    %v920 = vld [vmem:[#allocation6 + $0x178] sm:$0xff]
    %v921 = vld [vmem:[#allocation6 + $0x180] sm:$0xff]
    %v922 = vld [vmem:[#allocation6 + $0x188] sm:$0xff]
    %v923 = vld [vmem:[#allocation6 + $0x190] sm:$0xff]
    %v924 = vld [vmem:[#allocation6 + $0x198] sm:$0xff]
    %v925 = vld [vmem:[#allocation6 + $0x1a0] sm:$0xff]
    %v926 = vld [vmem:[#allocation6 + $0x1a8] sm:$0xff]
    %v927 = vld [vmem:[#allocation6 + $0x1b0] sm:$0xff]
    %v928 = vld [vmem:[#allocation6 + $0x1b8] sm:$0xff]
    %v929 = vld [vmem:[#allocation6 + $0x1c0] sm:$0xff]
    %v930 = vld [vmem:[#allocation6 + $0x1c8] sm:$0xff]
    %v931 = vld [vmem:[#allocation6 + $0x1d0] sm:$0xff]
    %v932 = vld [vmem:[#allocation6 + $0x1d8] sm:$0xff]
    %v933 = vld [vmem:[#allocation6 + $0x1e0] sm:$0xff]
    %v934 = vld [vmem:[#allocation6 + $0x1e8] sm:$0xff]
    %v935 = vld [vmem:[#allocation6 + $0x1f0] sm:$0xff]
    %v936 = vld [vmem:[#allocation6 + $0x1f8] sm:$0xff]
    %937 = vmatpush.msra.mxu0 %v933
    %938 = vmatpush.msra.mxu0 %v929
    %939 = vmatpush.msra.mxu0 %v925
    %940 = vmatpush.msra.mxu0 %v921
    %941 = vmatpush.msra.mxu0 %v917
    %942 = vmatpush.msra.mxu0 %v913
    %943 = vmatpush.msra.mxu0 %v909
    %944 = vmatpush.msra.mxu0 %v905
    %945 = vmatpush.msra.mxu0 %v901
    %946 = vmatpush.msra.mxu0 %v897
    %947 = vmatpush.msra.mxu0 %v893
    %948 = vmatpush.msra.mxu0 %v889
    %949 = vmatpush.msra.mxu0 %v885
    %950 = vmatpush.msra.mxu0 %v881
    %951 = vmatpush.msra.mxu0 %v877
    %952 = vmatpush.msra.mxu0 %v873
    %953 = vmatmul.f32.gmra.mxu0 %v866
    %v954 = vpop.f32.mrf.mxu0
    %v955 = vadd.f32 0.0, %v954
    %956 = vdwg.mxu0
    %957 = vmatpush.msra.mxu0 %v934
    %958 = vmatpush.msra.mxu0 %v930
    %959 = vmatpush.msra.mxu0 %v926
    %960 = vmatpush.msra.mxu0 %v922
    %961 = vmatpush.msra.mxu0 %v918
    %962 = vmatpush.msra.mxu0 %v914
    %963 = vmatpush.msra.mxu0 %v910
    %964 = vmatpush.msra.mxu0 %v906
    %965 = vmatpush.msra.mxu0 %v902
    %966 = vmatpush.msra.mxu0 %v898
    %967 = vmatpush.msra.mxu0 %v894
    %968 = vmatpush.msra.mxu0 %v890
    %969 = vmatpush.msra.mxu0 %v886
    %970 = vmatpush.msra.mxu0 %v882
    %971 = vmatpush.msra.mxu0 %v878
    %972 = vmatpush.msra.mxu0 %v874
    %973 = vmatmul.f32.gmra.mxu0 %v866
    %v974 = vpop.f32.mrf.mxu0
    %v975 = vadd.f32 0.0, %v974
    %976 = vdwg.mxu0
    %977 = vmatpush.msra.mxu0 %v935
    %978 = vmatpush.msra.mxu0 %v931
    %979 = vmatpush.msra.mxu0 %v927
    %980 = vmatpush.msra.mxu0 %v923
    %981 = vmatpush.msra.mxu0 %v919
    %982 = vmatpush.msra.mxu0 %v915
    %983 = vmatpush.msra.mxu0 %v911
    %984 = vmatpush.msra.mxu0 %v907
    %985 = vmatpush.msra.mxu0 %v903
    %986 = vmatpush.msra.mxu0 %v899
    %987 = vmatpush.msra.mxu0 %v895
    %988 = vmatpush.msra.mxu0 %v891
    %989 = vmatpush.msra.mxu0 %v887
    %990 = vmatpush.msra.mxu0 %v883
    %991 = vmatpush.msra.mxu0 %v879
    %992 = vmatpush.msra.mxu0 %v875
    %993 = vmatmul.f32.gmra.mxu0 %v866
    %v994 = vpop.f32.mrf.mxu0
    %v995 = vadd.f32 0.0, %v994
    %996 = vdwg.mxu0
    %997 = vmatpush.msra.mxu0 %v936
    %998 = vmatpush.msra.mxu0 %v932
    %999 = vmatpush.msra.mxu0 %v928
    %1000 = vmatpush.msra.mxu0 %v924
    %1001 = vmatpush.msra.mxu0 %v920
    %1002 = vmatpush.msra.mxu0 %v916
    %1003 = vmatpush.msra.mxu0 %v912
    %1004 = vmatpush.msra.mxu0 %v908
    %1005 = vmatpush.msra.mxu0 %v904
    %1006 = vmatpush.msra.mxu0 %v900
    %1007 = vmatpush.msra.mxu0 %v896
    %1008 = vmatpush.msra.mxu0 %v892
    %1009 = vmatpush.msra.mxu0 %v888
    %1010 = vmatpush.msra.mxu0 %v884
    %1011 = vmatpush.msra.mxu0 %v880
    %1012 = vmatpush.msra.mxu0 %v876
    %1013 = vmatmul.f32.gmra.mxu0 %v866
    %v1014 = vpop.f32.mrf.mxu0
    %v1015 = vadd.f32 0.0, %v1014
    %1016 = vdwg.mxu0
    %v1017 = vadd.f32 %v869, %v955
    %v1018 = vadd.f32 %v870, %v975
    %v1019 = vadd.f32 %v871, %v995
    %v1020 = vadd.f32 %v872, %v1015
    %v1021 = vxor.u32 %v1017, 2147483648
    %v1022 = vmul.f32 %v1021, 1.442695
    %v1023 = vpow.pop %v1022
    %v1024 = vadd.f32 %v1023, 1.0
    %v1025 = vrcp.pop %v1024
    %v1026 = vmul.f32 %v1024, %v1025
    %v1027 = vsub.f32 1.0, %v1026
    %v1028 = vmul.f32 %v1025, %v1027
    %v1029 = vadd.f32 %v1025, %v1028
    %vm1030 = vweird.f32 %v1024
    %vm1031 = vweird.f32 %v1025
    %vm1032 = vmor %vm1030, %vm1031
    %v1033 = vsel %vm1032, %v1025, %v1029
    %v1034 = vand.u32 2147483647, %v1024
    %vm1035 = vcmp.eq.f32.partialorder %v1034, 8.507059e+37
    %v1036 = vand.u32 %v1024, 2147483648
    %v1037 = vor.u32 1.1754944e-38, %v1036
    %v1038 = vsel %vm1035, %v1037, %v1033
    %v1039 = vmul.f32 1.0, %v1038
    %v1040 = vxor.u32 %v1018, 2147483648
    %v1041 = vmul.f32 %v1040, 1.442695
    %v1042 = vpow.pop %v1041
    %v1043 = vadd.f32 %v1042, 1.0
    %v1044 = vrcp.pop %v1043
    %v1045 = vmul.f32 %v1043, %v1044
    %v1046 = vsub.f32 1.0, %v1045
    %v1047 = vmul.f32 %v1044, %v1046
    %v1048 = vadd.f32 %v1044, %v1047
    %vm1049 = vweird.f32 %v1043
    %vm1050 = vweird.f32 %v1044
    %vm1051 = vmor %vm1049, %vm1050
    %v1052 = vsel %vm1051, %v1044, %v1048
    %v1053 = vand.u32 2147483647, %v1043
    %vm1054 = vcmp.eq.f32.partialorder %v1053, 8.507059e+37
    %v1055 = vand.u32 %v1043, 2147483648
    %v1056 = vor.u32 1.1754944e-38, %v1055
    %v1057 = vsel %vm1054, %v1056, %v1052
    %v1058 = vmul.f32 1.0, %v1057
    %v1059 = vtanh.pop %v1019
    %v1060 = vxor.u32 %v1020, 2147483648
    %v1061 = vmul.f32 %v1060, 1.442695
    %v1062 = vpow.pop %v1061
    %v1063 = vadd.f32 %v1062, 1.0
    %v1064 = vrcp.pop %v1063
    %v1065 = vmul.f32 %v1063, %v1064
    %v1066 = vsub.f32 1.0, %v1065
    %v1067 = vmul.f32 %v1064, %v1066
    %v1068 = vadd.f32 %v1064, %v1067
    %vm1069 = vweird.f32 %v1063
    %vm1070 = vweird.f32 %v1064
    %vm1071 = vmor %vm1069, %vm1070
    %v1072 = vsel %vm1071, %v1064, %v1068
    %v1073 = vand.u32 2147483647, %v1063
    %vm1074 = vcmp.eq.f32.partialorder %v1073, 8.507059e+37
    %v1075 = vand.u32 %v1063, 2147483648
    %v1076 = vor.u32 1.1754944e-38, %v1075
    %v1077 = vsel %vm1074, %v1076, %v1072
    %v1078 = vmul.f32 1.0, %v1077
    %v1079 = vmul.f32 %v1058, %v867
    %v1080 = vmul.f32 %v1039, %v1059
    %v1081 = vadd.f32 %v1079, %v1080
    %1082 = vst [vmem:[#allocation4] sm:$0xff] %v1081
    %v1083 = vtanh.pop %v1081
    %v1084 = vmul.f32 %v1078, %v1083
    %1085 = vst [vmem:[#allocation3] sm:$0xff] %v1084
    %v1086 = vld [vmem:[#allocation3] sm:$0xff]
    %v1087 = vld [vmem:[#allocation4] sm:$0xff]
    %s1088 = scalar_lea.vmem [#allocation2], 128
    %v1089 = vld [vmem:[%s1088] sm:$0xff]
    %v1090 = vld [vmem:[%s1088 + $0x8] sm:$0xff]
    %v1091 = vld [vmem:[%s1088 + $0x10] sm:$0xff]
    %v1092 = vld [vmem:[%s1088 + $0x18] sm:$0xff]
    %v1093 = vld [vmem:[#allocation6] sm:$0xff]
    %v1094 = vld [vmem:[#allocation6 + $0x8] sm:$0xff]
    %v1095 = vld [vmem:[#allocation6 + $0x10] sm:$0xff]
    %v1096 = vld [vmem:[#allocation6 + $0x18] sm:$0xff]
    %v1097 = vld [vmem:[#allocation6 + $0x20] sm:$0xff]
    %v1098 = vld [vmem:[#allocation6 + $0x28] sm:$0xff]
    %v1099 = vld [vmem:[#allocation6 + $0x30] sm:$0xff]
    %v1100 = vld [vmem:[#allocation6 + $0x38] sm:$0xff]
    %v1101 = vld [vmem:[#allocation6 + $0x40] sm:$0xff]
    %v1102 = vld [vmem:[#allocation6 + $0x48] sm:$0xff]
    %v1103 = vld [vmem:[#allocation6 + $0x50] sm:$0xff]
    %v1104 = vld [vmem:[#allocation6 + $0x58] sm:$0xff]
    %v1105 = vld [vmem:[#allocation6 + $0x60] sm:$0xff]
    %v1106 = vld [vmem:[#allocation6 + $0x68] sm:$0xff]
    %v1107 = vld [vmem:[#allocation6 + $0x70] sm:$0xff]
    %v1108 = vld [vmem:[#allocation6 + $0x78] sm:$0xff]
    %v1109 = vld [vmem:[#allocation6 + $0x80] sm:$0xff]
    %v1110 = vld [vmem:[#allocation6 + $0x88] sm:$0xff]
    %v1111 = vld [vmem:[#allocation6 + $0x90] sm:$0xff]
    %v1112 = vld [vmem:[#allocation6 + $0x98] sm:$0xff]
    %v1113 = vld [vmem:[#allocation6 + $0xa0] sm:$0xff]
    %v1114 = vld [vmem:[#allocation6 + $0xa8] sm:$0xff]
    %v1115 = vld [vmem:[#allocation6 + $0xb0] sm:$0xff]
    %v1116 = vld [vmem:[#allocation6 + $0xb8] sm:$0xff]
    %v1117 = vld [vmem:[#allocation6 + $0xc0] sm:$0xff]
    %v1118 = vld [vmem:[#allocation6 + $0xc8] sm:$0xff]
    %v1119 = vld [vmem:[#allocation6 + $0xd0] sm:$0xff]
    %v1120 = vld [vmem:[#allocation6 + $0xd8] sm:$0xff]
    %v1121 = vld [vmem:[#allocation6 + $0xe0] sm:$0xff]
    %v1122 = vld [vmem:[#allocation6 + $0xe8] sm:$0xff]
    %v1123 = vld [vmem:[#allocation6 + $0xf0] sm:$0xff]
    %v1124 = vld [vmem:[#allocation6 + $0xf8] sm:$0xff]
    %v1125 = vld [vmem:[#allocation6 + $0x100] sm:$0xff]
    %v1126 = vld [vmem:[#allocation6 + $0x108] sm:$0xff]
    %v1127 = vld [vmem:[#allocation6 + $0x110] sm:$0xff]
    %v1128 = vld [vmem:[#allocation6 + $0x118] sm:$0xff]
    %v1129 = vld [vmem:[#allocation6 + $0x120] sm:$0xff]
    %v1130 = vld [vmem:[#allocation6 + $0x128] sm:$0xff]
    %v1131 = vld [vmem:[#allocation6 + $0x130] sm:$0xff]
    %v1132 = vld [vmem:[#allocation6 + $0x138] sm:$0xff]
    %v1133 = vld [vmem:[#allocation6 + $0x140] sm:$0xff]
    %v1134 = vld [vmem:[#allocation6 + $0x148] sm:$0xff]
    %v1135 = vld [vmem:[#allocation6 + $0x150] sm:$0xff]
    %v1136 = vld [vmem:[#allocation6 + $0x158] sm:$0xff]
    %v1137 = vld [vmem:[#allocation6 + $0x160] sm:$0xff]
    %v1138 = vld [vmem:[#allocation6 + $0x168] sm:$0xff]
    %v1139 = vld [vmem:[#allocation6 + $0x170] sm:$0xff]
    %v1140 = vld [vmem:[#allocation6 + $0x178] sm:$0xff]
    %v1141 = vld [vmem:[#allocation6 + $0x180] sm:$0xff]
    %v1142 = vld [vmem:[#allocation6 + $0x188] sm:$0xff]
    %v1143 = vld [vmem:[#allocation6 + $0x190] sm:$0xff]
    %v1144 = vld [vmem:[#allocation6 + $0x198] sm:$0xff]
    %v1145 = vld [vmem:[#allocation6 + $0x1a0] sm:$0xff]
    %v1146 = vld [vmem:[#allocation6 + $0x1a8] sm:$0xff]
    %v1147 = vld [vmem:[#allocation6 + $0x1b0] sm:$0xff]
    %v1148 = vld [vmem:[#allocation6 + $0x1b8] sm:$0xff]
    %v1149 = vld [vmem:[#allocation6 + $0x1c0] sm:$0xff]
    %v1150 = vld [vmem:[#allocation6 + $0x1c8] sm:$0xff]
    %v1151 = vld [vmem:[#allocation6 + $0x1d0] sm:$0xff]
    %v1152 = vld [vmem:[#allocation6 + $0x1d8] sm:$0xff]
    %v1153 = vld [vmem:[#allocation6 + $0x1e0] sm:$0xff]
    %v1154 = vld [vmem:[#allocation6 + $0x1e8] sm:$0xff]
    %v1155 = vld [vmem:[#allocation6 + $0x1f0] sm:$0xff]
    %v1156 = vld [vmem:[#allocation6 + $0x1f8] sm:$0xff]
    %1157 = vmatpush.msra.mxu0 %v1153
    %1158 = vmatpush.msra.mxu0 %v1149
    %1159 = vmatpush.msra.mxu0 %v1145
    %1160 = vmatpush.msra.mxu0 %v1141
    %1161 = vmatpush.msra.mxu0 %v1137
    %1162 = vmatpush.msra.mxu0 %v1133
    %1163 = vmatpush.msra.mxu0 %v1129
    %1164 = vmatpush.msra.mxu0 %v1125
    %1165 = vmatpush.msra.mxu0 %v1121
    %1166 = vmatpush.msra.mxu0 %v1117
    %1167 = vmatpush.msra.mxu0 %v1113
    %1168 = vmatpush.msra.mxu0 %v1109
    %1169 = vmatpush.msra.mxu0 %v1105
    %1170 = vmatpush.msra.mxu0 %v1101
    %1171 = vmatpush.msra.mxu0 %v1097
    %1172 = vmatpush.msra.mxu0 %v1093
    %1173 = vmatmul.f32.gmra.mxu0 %v1086
    %v1174 = vpop.f32.mrf.mxu0
    %v1175 = vadd.f32 0.0, %v1174
    %1176 = vdwg.mxu0
    %1177 = vmatpush.msra.mxu0 %v1154
    %1178 = vmatpush.msra.mxu0 %v1150
    %1179 = vmatpush.msra.mxu0 %v1146
    %1180 = vmatpush.msra.mxu0 %v1142
    %1181 = vmatpush.msra.mxu0 %v1138
    %1182 = vmatpush.msra.mxu0 %v1134
    %1183 = vmatpush.msra.mxu0 %v1130
    %1184 = vmatpush.msra.mxu0 %v1126
    %1185 = vmatpush.msra.mxu0 %v1122
    %1186 = vmatpush.msra.mxu0 %v1118
    %1187 = vmatpush.msra.mxu0 %v1114
    %1188 = vmatpush.msra.mxu0 %v1110
    %1189 = vmatpush.msra.mxu0 %v1106
    %1190 = vmatpush.msra.mxu0 %v1102
    %1191 = vmatpush.msra.mxu0 %v1098
    %1192 = vmatpush.msra.mxu0 %v1094
    %1193 = vmatmul.f32.gmra.mxu0 %v1086
    %v1194 = vpop.f32.mrf.mxu0
    %v1195 = vadd.f32 0.0, %v1194
    %1196 = vdwg.mxu0
    %1197 = vmatpush.msra.mxu0 %v1155
    %1198 = vmatpush.msra.mxu0 %v1151
    %1199 = vmatpush.msra.mxu0 %v1147
    %1200 = vmatpush.msra.mxu0 %v1143
    %1201 = vmatpush.msra.mxu0 %v1139
    %1202 = vmatpush.msra.mxu0 %v1135
    %1203 = vmatpush.msra.mxu0 %v1131
    %1204 = vmatpush.msra.mxu0 %v1127
    %1205 = vmatpush.msra.mxu0 %v1123
    %1206 = vmatpush.msra.mxu0 %v1119
    %1207 = vmatpush.msra.mxu0 %v1115
    %1208 = vmatpush.msra.mxu0 %v1111
    %1209 = vmatpush.msra.mxu0 %v1107
    %1210 = vmatpush.msra.mxu0 %v1103
    %1211 = vmatpush.msra.mxu0 %v1099
    %1212 = vmatpush.msra.mxu0 %v1095
    %1213 = vmatmul.f32.gmra.mxu0 %v1086
    %v1214 = vpop.f32.mrf.mxu0
    %v1215 = vadd.f32 0.0, %v1214
    %1216 = vdwg.mxu0
    %1217 = vmatpush.msra.mxu0 %v1156
    %1218 = vmatpush.msra.mxu0 %v1152
    %1219 = vmatpush.msra.mxu0 %v1148
    %1220 = vmatpush.msra.mxu0 %v1144
    %1221 = vmatpush.msra.mxu0 %v1140
    %1222 = vmatpush.msra.mxu0 %v1136
    %1223 = vmatpush.msra.mxu0 %v1132
    %1224 = vmatpush.msra.mxu0 %v1128
    %1225 = vmatpush.msra.mxu0 %v1124
    %1226 = vmatpush.msra.mxu0 %v1120
    %1227 = vmatpush.msra.mxu0 %v1116
    %1228 = vmatpush.msra.mxu0 %v1112
    %1229 = vmatpush.msra.mxu0 %v1108
    %1230 = vmatpush.msra.mxu0 %v1104
    %1231 = vmatpush.msra.mxu0 %v1100
    %1232 = vmatpush.msra.mxu0 %v1096
    %1233 = vmatmul.f32.gmra.mxu0 %v1086
    %v1234 = vpop.f32.mrf.mxu0
    %v1235 = vadd.f32 0.0, %v1234
    %1236 = vdwg.mxu0
    %v1237 = vadd.f32 %v1089, %v1175
    %v1238 = vadd.f32 %v1090, %v1195
    %v1239 = vadd.f32 %v1091, %v1215
    %v1240 = vadd.f32 %v1092, %v1235
    %v1241 = vxor.u32 %v1237, 2147483648
    %v1242 = vmul.f32 %v1241, 1.442695
    %v1243 = vpow.pop %v1242
    %v1244 = vadd.f32 %v1243, 1.0
    %v1245 = vrcp.pop %v1244
    %v1246 = vmul.f32 %v1244, %v1245
    %v1247 = vsub.f32 1.0, %v1246
    %v1248 = vmul.f32 %v1245, %v1247
    %v1249 = vadd.f32 %v1245, %v1248
    %vm1250 = vweird.f32 %v1244
    %vm1251 = vweird.f32 %v1245
    %vm1252 = vmor %vm1250, %vm1251
    %v1253 = vsel %vm1252, %v1245, %v1249
    %v1254 = vand.u32 2147483647, %v1244
    %vm1255 = vcmp.eq.f32.partialorder %v1254, 8.507059e+37
    %v1256 = vand.u32 %v1244, 2147483648
    %v1257 = vor.u32 1.1754944e-38, %v1256
    %v1258 = vsel %vm1255, %v1257, %v1253
    %v1259 = vmul.f32 1.0, %v1258
    %v1260 = vxor.u32 %v1238, 2147483648
    %v1261 = vmul.f32 %v1260, 1.442695
    %v1262 = vpow.pop %v1261
    %v1263 = vadd.f32 %v1262, 1.0
    %v1264 = vrcp.pop %v1263
    %v1265 = vmul.f32 %v1263, %v1264
    %v1266 = vsub.f32 1.0, %v1265
    %v1267 = vmul.f32 %v1264, %v1266
    %v1268 = vadd.f32 %v1264, %v1267
    %vm1269 = vweird.f32 %v1263
    %vm1270 = vweird.f32 %v1264
    %vm1271 = vmor %vm1269, %vm1270
    %v1272 = vsel %vm1271, %v1264, %v1268
    %v1273 = vand.u32 2147483647, %v1263
    %vm1274 = vcmp.eq.f32.partialorder %v1273, 8.507059e+37
    %v1275 = vand.u32 %v1263, 2147483648
    %v1276 = vor.u32 1.1754944e-38, %v1275
    %v1277 = vsel %vm1274, %v1276, %v1272
    %v1278 = vmul.f32 1.0, %v1277
    %v1279 = vtanh.pop %v1239
    %v1280 = vxor.u32 %v1240, 2147483648
    %v1281 = vmul.f32 %v1280, 1.442695
    %v1282 = vpow.pop %v1281
    %v1283 = vadd.f32 %v1282, 1.0
    %v1284 = vrcp.pop %v1283
    %v1285 = vmul.f32 %v1283, %v1284
    %v1286 = vsub.f32 1.0, %v1285
    %v1287 = vmul.f32 %v1284, %v1286
    %v1288 = vadd.f32 %v1284, %v1287
    %vm1289 = vweird.f32 %v1283
    %vm1290 = vweird.f32 %v1284
    %vm1291 = vmor %vm1289, %vm1290
    %v1292 = vsel %vm1291, %v1284, %v1288
    %v1293 = vand.u32 2147483647, %v1283
    %vm1294 = vcmp.eq.f32.partialorder %v1293, 8.507059e+37
    %v1295 = vand.u32 %v1283, 2147483648
    %v1296 = vor.u32 1.1754944e-38, %v1295
    %v1297 = vsel %vm1294, %v1296, %v1292
    %v1298 = vmul.f32 1.0, %v1297
    %v1299 = vmul.f32 %v1278, %v1087
    %v1300 = vmul.f32 %v1259, %v1279
    %v1301 = vadd.f32 %v1299, %v1300
    %1302 = vst [vmem:[#allocation4] sm:$0xff] %v1301
    %v1303 = vtanh.pop %v1301
    %v1304 = vmul.f32 %v1298, %v1303
    %1305 = vst [vmem:[#allocation3] sm:$0xff] %v1304
    %v1306 = vld [vmem:[#allocation3] sm:$0xff]
    %v1307 = vld [vmem:[#allocation4] sm:$0xff]
    %s1308 = scalar_lea.vmem [#allocation2], 160
    %v1309 = vld [vmem:[%s1308] sm:$0xff]
    %v1310 = vld [vmem:[%s1308 + $0x8] sm:$0xff]
    %v1311 = vld [vmem:[%s1308 + $0x10] sm:$0xff]
    %v1312 = vld [vmem:[%s1308 + $0x18] sm:$0xff]
    %v1313 = vld [vmem:[#allocation6] sm:$0xff]
    %v1314 = vld [vmem:[#allocation6 + $0x8] sm:$0xff]
    %v1315 = vld [vmem:[#allocation6 + $0x10] sm:$0xff]
    %v1316 = vld [vmem:[#allocation6 + $0x18] sm:$0xff]
    %v1317 = vld [vmem:[#allocation6 + $0x20] sm:$0xff]
    %v1318 = vld [vmem:[#allocation6 + $0x28] sm:$0xff]
    %v1319 = vld [vmem:[#allocation6 + $0x30] sm:$0xff]
    %v1320 = vld [vmem:[#allocation6 + $0x38] sm:$0xff]
    %v1321 = vld [vmem:[#allocation6 + $0x40] sm:$0xff]
    %v1322 = vld [vmem:[#allocation6 + $0x48] sm:$0xff]
    %v1323 = vld [vmem:[#allocation6 + $0x50] sm:$0xff]
    %v1324 = vld [vmem:[#allocation6 + $0x58] sm:$0xff]
    %v1325 = vld [vmem:[#allocation6 + $0x60] sm:$0xff]
    %v1326 = vld [vmem:[#allocation6 + $0x68] sm:$0xff]
    %v1327 = vld [vmem:[#allocation6 + $0x70] sm:$0xff]
    %v1328 = vld [vmem:[#allocation6 + $0x78] sm:$0xff]
    %v1329 = vld [vmem:[#allocation6 + $0x80] sm:$0xff]
    %v1330 = vld [vmem:[#allocation6 + $0x88] sm:$0xff]
    %v1331 = vld [vmem:[#allocation6 + $0x90] sm:$0xff]
    %v1332 = vld [vmem:[#allocation6 + $0x98] sm:$0xff]
    %v1333 = vld [vmem:[#allocation6 + $0xa0] sm:$0xff]
    %v1334 = vld [vmem:[#allocation6 + $0xa8] sm:$0xff]
    %v1335 = vld [vmem:[#allocation6 + $0xb0] sm:$0xff]
    %v1336 = vld [vmem:[#allocation6 + $0xb8] sm:$0xff]
    %v1337 = vld [vmem:[#allocation6 + $0xc0] sm:$0xff]
    %v1338 = vld [vmem:[#allocation6 + $0xc8] sm:$0xff]
    %v1339 = vld [vmem:[#allocation6 + $0xd0] sm:$0xff]
    %v1340 = vld [vmem:[#allocation6 + $0xd8] sm:$0xff]
    %v1341 = vld [vmem:[#allocation6 + $0xe0] sm:$0xff]
    %v1342 = vld [vmem:[#allocation6 + $0xe8] sm:$0xff]
    %v1343 = vld [vmem:[#allocation6 + $0xf0] sm:$0xff]
    %v1344 = vld [vmem:[#allocation6 + $0xf8] sm:$0xff]
    %v1345 = vld [vmem:[#allocation6 + $0x100] sm:$0xff]
    %v1346 = vld [vmem:[#allocation6 + $0x108] sm:$0xff]
    %v1347 = vld [vmem:[#allocation6 + $0x110] sm:$0xff]
    %v1348 = vld [vmem:[#allocation6 + $0x118] sm:$0xff]
    %v1349 = vld [vmem:[#allocation6 + $0x120] sm:$0xff]
    %v1350 = vld [vmem:[#allocation6 + $0x128] sm:$0xff]
    %v1351 = vld [vmem:[#allocation6 + $0x130] sm:$0xff]
    %v1352 = vld [vmem:[#allocation6 + $0x138] sm:$0xff]
    %v1353 = vld [vmem:[#allocation6 + $0x140] sm:$0xff]
    %v1354 = vld [vmem:[#allocation6 + $0x148] sm:$0xff]
    %v1355 = vld [vmem:[#allocation6 + $0x150] sm:$0xff]
    %v1356 = vld [vmem:[#allocation6 + $0x158] sm:$0xff]
    %v1357 = vld [vmem:[#allocation6 + $0x160] sm:$0xff]
    %v1358 = vld [vmem:[#allocation6 + $0x168] sm:$0xff]
    %v1359 = vld [vmem:[#allocation6 + $0x170] sm:$0xff]
    %v1360 = vld [vmem:[#allocation6 + $0x178] sm:$0xff]
    %v1361 = vld [vmem:[#allocation6 + $0x180] sm:$0xff]
    %v1362 = vld [vmem:[#allocation6 + $0x188] sm:$0xff]
    %v1363 = vld [vmem:[#allocation6 + $0x190] sm:$0xff]
    %v1364 = vld [vmem:[#allocation6 + $0x198] sm:$0xff]
    %v1365 = vld [vmem:[#allocation6 + $0x1a0] sm:$0xff]
    %v1366 = vld [vmem:[#allocation6 + $0x1a8] sm:$0xff]
    %v1367 = vld [vmem:[#allocation6 + $0x1b0] sm:$0xff]
    %v1368 = vld [vmem:[#allocation6 + $0x1b8] sm:$0xff]
    %v1369 = vld [vmem:[#allocation6 + $0x1c0] sm:$0xff]
    %v1370 = vld [vmem:[#allocation6 + $0x1c8] sm:$0xff]
    %v1371 = vld [vmem:[#allocation6 + $0x1d0] sm:$0xff]
    %v1372 = vld [vmem:[#allocation6 + $0x1d8] sm:$0xff]
    %v1373 = vld [vmem:[#allocation6 + $0x1e0] sm:$0xff]
    %v1374 = vld [vmem:[#allocation6 + $0x1e8] sm:$0xff]
    %v1375 = vld [vmem:[#allocation6 + $0x1f0] sm:$0xff]
    %v1376 = vld [vmem:[#allocation6 + $0x1f8] sm:$0xff]
    %1377 = vmatpush.msra.mxu0 %v1373
    %1378 = vmatpush.msra.mxu0 %v1369
    %1379 = vmatpush.msra.mxu0 %v1365
    %1380 = vmatpush.msra.mxu0 %v1361
    %1381 = vmatpush.msra.mxu0 %v1357
    %1382 = vmatpush.msra.mxu0 %v1353
    %1383 = vmatpush.msra.mxu0 %v1349
    %1384 = vmatpush.msra.mxu0 %v1345
    %1385 = vmatpush.msra.mxu0 %v1341
    %1386 = vmatpush.msra.mxu0 %v1337
    %1387 = vmatpush.msra.mxu0 %v1333
    %1388 = vmatpush.msra.mxu0 %v1329
    %1389 = vmatpush.msra.mxu0 %v1325
    %1390 = vmatpush.msra.mxu0 %v1321
    %1391 = vmatpush.msra.mxu0 %v1317
    %1392 = vmatpush.msra.mxu0 %v1313
    %1393 = vmatmul.f32.gmra.mxu0 %v1306
    %v1394 = vpop.f32.mrf.mxu0
    %v1395 = vadd.f32 0.0, %v1394
    %1396 = vdwg.mxu0
    %1397 = vmatpush.msra.mxu0 %v1374
    %1398 = vmatpush.msra.mxu0 %v1370
    %1399 = vmatpush.msra.mxu0 %v1366
    %1400 = vmatpush.msra.mxu0 %v1362
    %1401 = vmatpush.msra.mxu0 %v1358
    %1402 = vmatpush.msra.mxu0 %v1354
    %1403 = vmatpush.msra.mxu0 %v1350
    %1404 = vmatpush.msra.mxu0 %v1346
    %1405 = vmatpush.msra.mxu0 %v1342
    %1406 = vmatpush.msra.mxu0 %v1338
    %1407 = vmatpush.msra.mxu0 %v1334
    %1408 = vmatpush.msra.mxu0 %v1330
    %1409 = vmatpush.msra.mxu0 %v1326
    %1410 = vmatpush.msra.mxu0 %v1322
    %1411 = vmatpush.msra.mxu0 %v1318
    %1412 = vmatpush.msra.mxu0 %v1314
    %1413 = vmatmul.f32.gmra.mxu0 %v1306
    %v1414 = vpop.f32.mrf.mxu0
    %v1415 = vadd.f32 0.0, %v1414
    %1416 = vdwg.mxu0
    %1417 = vmatpush.msra.mxu0 %v1375
    %1418 = vmatpush.msra.mxu0 %v1371
    %1419 = vmatpush.msra.mxu0 %v1367
    %1420 = vmatpush.msra.mxu0 %v1363
    %1421 = vmatpush.msra.mxu0 %v1359
    %1422 = vmatpush.msra.mxu0 %v1355
    %1423 = vmatpush.msra.mxu0 %v1351
    %1424 = vmatpush.msra.mxu0 %v1347
    %1425 = vmatpush.msra.mxu0 %v1343
    %1426 = vmatpush.msra.mxu0 %v1339
    %1427 = vmatpush.msra.mxu0 %v1335
    %1428 = vmatpush.msra.mxu0 %v1331
    %1429 = vmatpush.msra.mxu0 %v1327
    %1430 = vmatpush.msra.mxu0 %v1323
    %1431 = vmatpush.msra.mxu0 %v1319
    %1432 = vmatpush.msra.mxu0 %v1315
    %1433 = vmatmul.f32.gmra.mxu0 %v1306
    %v1434 = vpop.f32.mrf.mxu0
    %v1435 = vadd.f32 0.0, %v1434
    %1436 = vdwg.mxu0
    %1437 = vmatpush.msra.mxu0 %v1376
    %1438 = vmatpush.msra.mxu0 %v1372
    %1439 = vmatpush.msra.mxu0 %v1368
    %1440 = vmatpush.msra.mxu0 %v1364
    %1441 = vmatpush.msra.mxu0 %v1360
    %1442 = vmatpush.msra.mxu0 %v1356
    %1443 = vmatpush.msra.mxu0 %v1352
    %1444 = vmatpush.msra.mxu0 %v1348
    %1445 = vmatpush.msra.mxu0 %v1344
    %1446 = vmatpush.msra.mxu0 %v1340
    %1447 = vmatpush.msra.mxu0 %v1336
    %1448 = vmatpush.msra.mxu0 %v1332
    %1449 = vmatpush.msra.mxu0 %v1328
    %1450 = vmatpush.msra.mxu0 %v1324
    %1451 = vmatpush.msra.mxu0 %v1320
    %1452 = vmatpush.msra.mxu0 %v1316
    %1453 = vmatmul.f32.gmra.mxu0 %v1306
    %v1454 = vpop.f32.mrf.mxu0
    %v1455 = vadd.f32 0.0, %v1454
    %1456 = vdwg.mxu0
    %v1457 = vadd.f32 %v1309, %v1395
    %v1458 = vadd.f32 %v1310, %v1415
    %v1459 = vadd.f32 %v1311, %v1435
    %v1460 = vadd.f32 %v1312, %v1455
    %v1461 = vxor.u32 %v1457, 2147483648
    %v1462 = vmul.f32 %v1461, 1.442695
    %v1463 = vpow.pop %v1462
    %v1464 = vadd.f32 %v1463, 1.0
    %v1465 = vrcp.pop %v1464
    %v1466 = vmul.f32 %v1464, %v1465
    %v1467 = vsub.f32 1.0, %v1466
    %v1468 = vmul.f32 %v1465, %v1467
    %v1469 = vadd.f32 %v1465, %v1468
    %vm1470 = vweird.f32 %v1464
    %vm1471 = vweird.f32 %v1465
    %vm1472 = vmor %vm1470, %vm1471
    %v1473 = vsel %vm1472, %v1465, %v1469
    %v1474 = vand.u32 2147483647, %v1464
    %vm1475 = vcmp.eq.f32.partialorder %v1474, 8.507059e+37
    %v1476 = vand.u32 %v1464, 2147483648
    %v1477 = vor.u32 1.1754944e-38, %v1476
    %v1478 = vsel %vm1475, %v1477, %v1473
    %v1479 = vmul.f32 1.0, %v1478
    %v1480 = vxor.u32 %v1458, 2147483648
    %v1481 = vmul.f32 %v1480, 1.442695
    %v1482 = vpow.pop %v1481
    %v1483 = vadd.f32 %v1482, 1.0
    %v1484 = vrcp.pop %v1483
    %v1485 = vmul.f32 %v1483, %v1484
    %v1486 = vsub.f32 1.0, %v1485
    %v1487 = vmul.f32 %v1484, %v1486
    %v1488 = vadd.f32 %v1484, %v1487
    %vm1489 = vweird.f32 %v1483
    %vm1490 = vweird.f32 %v1484
    %vm1491 = vmor %vm1489, %vm1490
    %v1492 = vsel %vm1491, %v1484, %v1488
    %v1493 = vand.u32 2147483647, %v1483
    %vm1494 = vcmp.eq.f32.partialorder %v1493, 8.507059e+37
    %v1495 = vand.u32 %v1483, 2147483648
    %v1496 = vor.u32 1.1754944e-38, %v1495
    %v1497 = vsel %vm1494, %v1496, %v1492
    %v1498 = vmul.f32 1.0, %v1497
    %v1499 = vtanh.pop %v1459
    %v1500 = vxor.u32 %v1460, 2147483648
    %v1501 = vmul.f32 %v1500, 1.442695
    %v1502 = vpow.pop %v1501
    %v1503 = vadd.f32 %v1502, 1.0
    %v1504 = vrcp.pop %v1503
    %v1505 = vmul.f32 %v1503, %v1504
    %v1506 = vsub.f32 1.0, %v1505
    %v1507 = vmul.f32 %v1504, %v1506
    %v1508 = vadd.f32 %v1504, %v1507
    %vm1509 = vweird.f32 %v1503
    %vm1510 = vweird.f32 %v1504
    %vm1511 = vmor %vm1509, %vm1510
    %v1512 = vsel %vm1511, %v1504, %v1508
    %v1513 = vand.u32 2147483647, %v1503
    %vm1514 = vcmp.eq.f32.partialorder %v1513, 8.507059e+37
    %v1515 = vand.u32 %v1503, 2147483648
    %v1516 = vor.u32 1.1754944e-38, %v1515
    %v1517 = vsel %vm1514, %v1516, %v1512
    %v1518 = vmul.f32 1.0, %v1517
    %v1519 = vmul.f32 %v1498, %v1307
    %v1520 = vmul.f32 %v1479, %v1499
    %v1521 = vadd.f32 %v1519, %v1520
    %1522 = vst [vmem:[#allocation4] sm:$0xff] %v1521
    %v1523 = vtanh.pop %v1521
    %v1524 = vmul.f32 %v1518, %v1523
    %1525 = vst [vmem:[#allocation3] sm:$0xff] %v1524
    %v1526 = vld [vmem:[#allocation3] sm:$0xff]
    %v1527 = vld [vmem:[#allocation4] sm:$0xff]
    %s1528 = scalar_lea.vmem [#allocation2], 192
    %v1529 = vld [vmem:[%s1528] sm:$0xff]
    %v1530 = vld [vmem:[%s1528 + $0x8] sm:$0xff]
    %v1531 = vld [vmem:[%s1528 + $0x10] sm:$0xff]
    %v1532 = vld [vmem:[%s1528 + $0x18] sm:$0xff]
    %v1533 = vld [vmem:[#allocation6] sm:$0xff]
    %v1534 = vld [vmem:[#allocation6 + $0x8] sm:$0xff]
    %v1535 = vld [vmem:[#allocation6 + $0x10] sm:$0xff]
    %v1536 = vld [vmem:[#allocation6 + $0x18] sm:$0xff]
    %v1537 = vld [vmem:[#allocation6 + $0x20] sm:$0xff]
    %v1538 = vld [vmem:[#allocation6 + $0x28] sm:$0xff]
    %v1539 = vld [vmem:[#allocation6 + $0x30] sm:$0xff]
    %v1540 = vld [vmem:[#allocation6 + $0x38] sm:$0xff]
    %v1541 = vld [vmem:[#allocation6 + $0x40] sm:$0xff]
    %v1542 = vld [vmem:[#allocation6 + $0x48] sm:$0xff]
    %v1543 = vld [vmem:[#allocation6 + $0x50] sm:$0xff]
    %v1544 = vld [vmem:[#allocation6 + $0x58] sm:$0xff]
    %v1545 = vld [vmem:[#allocation6 + $0x60] sm:$0xff]
    %v1546 = vld [vmem:[#allocation6 + $0x68] sm:$0xff]
    %v1547 = vld [vmem:[#allocation6 + $0x70] sm:$0xff]
    %v1548 = vld [vmem:[#allocation6 + $0x78] sm:$0xff]
    %v1549 = vld [vmem:[#allocation6 + $0x80] sm:$0xff]
    %v1550 = vld [vmem:[#allocation6 + $0x88] sm:$0xff]
    %v1551 = vld [vmem:[#allocation6 + $0x90] sm:$0xff]
    %v1552 = vld [vmem:[#allocation6 + $0x98] sm:$0xff]
    %v1553 = vld [vmem:[#allocation6 + $0xa0] sm:$0xff]
    %v1554 = vld [vmem:[#allocation6 + $0xa8] sm:$0xff]
    %v1555 = vld [vmem:[#allocation6 + $0xb0] sm:$0xff]
    %v1556 = vld [vmem:[#allocation6 + $0xb8] sm:$0xff]
    %v1557 = vld [vmem:[#allocation6 + $0xc0] sm:$0xff]
    %v1558 = vld [vmem:[#allocation6 + $0xc8] sm:$0xff]
    %v1559 = vld [vmem:[#allocation6 + $0xd0] sm:$0xff]
    %v1560 = vld [vmem:[#allocation6 + $0xd8] sm:$0xff]
    %v1561 = vld [vmem:[#allocation6 + $0xe0] sm:$0xff]
    %v1562 = vld [vmem:[#allocation6 + $0xe8] sm:$0xff]
    %v1563 = vld [vmem:[#allocation6 + $0xf0] sm:$0xff]
    %v1564 = vld [vmem:[#allocation6 + $0xf8] sm:$0xff]
    %v1565 = vld [vmem:[#allocation6 + $0x100] sm:$0xff]
    %v1566 = vld [vmem:[#allocation6 + $0x108] sm:$0xff]
    %v1567 = vld [vmem:[#allocation6 + $0x110] sm:$0xff]
    %v1568 = vld [vmem:[#allocation6 + $0x118] sm:$0xff]
    %v1569 = vld [vmem:[#allocation6 + $0x120] sm:$0xff]
    %v1570 = vld [vmem:[#allocation6 + $0x128] sm:$0xff]
    %v1571 = vld [vmem:[#allocation6 + $0x130] sm:$0xff]
    %v1572 = vld [vmem:[#allocation6 + $0x138] sm:$0xff]
    %v1573 = vld [vmem:[#allocation6 + $0x140] sm:$0xff]
    %v1574 = vld [vmem:[#allocation6 + $0x148] sm:$0xff]
    %v1575 = vld [vmem:[#allocation6 + $0x150] sm:$0xff]
    %v1576 = vld [vmem:[#allocation6 + $0x158] sm:$0xff]
    %v1577 = vld [vmem:[#allocation6 + $0x160] sm:$0xff]
    %v1578 = vld [vmem:[#allocation6 + $0x168] sm:$0xff]
    %v1579 = vld [vmem:[#allocation6 + $0x170] sm:$0xff]
    %v1580 = vld [vmem:[#allocation6 + $0x178] sm:$0xff]
    %v1581 = vld [vmem:[#allocation6 + $0x180] sm:$0xff]
    %v1582 = vld [vmem:[#allocation6 + $0x188] sm:$0xff]
    %v1583 = vld [vmem:[#allocation6 + $0x190] sm:$0xff]
    %v1584 = vld [vmem:[#allocation6 + $0x198] sm:$0xff]
    %v1585 = vld [vmem:[#allocation6 + $0x1a0] sm:$0xff]
    %v1586 = vld [vmem:[#allocation6 + $0x1a8] sm:$0xff]
    %v1587 = vld [vmem:[#allocation6 + $0x1b0] sm:$0xff]
    %v1588 = vld [vmem:[#allocation6 + $0x1b8] sm:$0xff]
    %v1589 = vld [vmem:[#allocation6 + $0x1c0] sm:$0xff]
    %v1590 = vld [vmem:[#allocation6 + $0x1c8] sm:$0xff]
    %v1591 = vld [vmem:[#allocation6 + $0x1d0] sm:$0xff]
    %v1592 = vld [vmem:[#allocation6 + $0x1d8] sm:$0xff]
    %v1593 = vld [vmem:[#allocation6 + $0x1e0] sm:$0xff]
    %v1594 = vld [vmem:[#allocation6 + $0x1e8] sm:$0xff]
    %v1595 = vld [vmem:[#allocation6 + $0x1f0] sm:$0xff]
    %v1596 = vld [vmem:[#allocation6 + $0x1f8] sm:$0xff]
    %1597 = vmatpush.msra.mxu0 %v1593
    %1598 = vmatpush.msra.mxu0 %v1589
    %1599 = vmatpush.msra.mxu0 %v1585
    %1600 = vmatpush.msra.mxu0 %v1581
    %1601 = vmatpush.msra.mxu0 %v1577
    %1602 = vmatpush.msra.mxu0 %v1573
    %1603 = vmatpush.msra.mxu0 %v1569
    %1604 = vmatpush.msra.mxu0 %v1565
    %1605 = vmatpush.msra.mxu0 %v1561
    %1606 = vmatpush.msra.mxu0 %v1557
    %1607 = vmatpush.msra.mxu0 %v1553
    %1608 = vmatpush.msra.mxu0 %v1549
    %1609 = vmatpush.msra.mxu0 %v1545
    %1610 = vmatpush.msra.mxu0 %v1541
    %1611 = vmatpush.msra.mxu0 %v1537
    %1612 = vmatpush.msra.mxu0 %v1533
    %1613 = vmatmul.f32.gmra.mxu0 %v1526
    %v1614 = vpop.f32.mrf.mxu0
    %v1615 = vadd.f32 0.0, %v1614
    %1616 = vdwg.mxu0
    %1617 = vmatpush.msra.mxu0 %v1594
    %1618 = vmatpush.msra.mxu0 %v1590
    %1619 = vmatpush.msra.mxu0 %v1586
    %1620 = vmatpush.msra.mxu0 %v1582
    %1621 = vmatpush.msra.mxu0 %v1578
    %1622 = vmatpush.msra.mxu0 %v1574
    %1623 = vmatpush.msra.mxu0 %v1570
    %1624 = vmatpush.msra.mxu0 %v1566
    %1625 = vmatpush.msra.mxu0 %v1562
    %1626 = vmatpush.msra.mxu0 %v1558
    %1627 = vmatpush.msra.mxu0 %v1554
    %1628 = vmatpush.msra.mxu0 %v1550
    %1629 = vmatpush.msra.mxu0 %v1546
    %1630 = vmatpush.msra.mxu0 %v1542
    %1631 = vmatpush.msra.mxu0 %v1538
    %1632 = vmatpush.msra.mxu0 %v1534
    %1633 = vmatmul.f32.gmra.mxu0 %v1526
    %v1634 = vpop.f32.mrf.mxu0
    %v1635 = vadd.f32 0.0, %v1634
    %1636 = vdwg.mxu0
    %1637 = vmatpush.msra.mxu0 %v1595
    %1638 = vmatpush.msra.mxu0 %v1591
    %1639 = vmatpush.msra.mxu0 %v1587
    %1640 = vmatpush.msra.mxu0 %v1583
    %1641 = vmatpush.msra.mxu0 %v1579
    %1642 = vmatpush.msra.mxu0 %v1575
    %1643 = vmatpush.msra.mxu0 %v1571
    %1644 = vmatpush.msra.mxu0 %v1567
    %1645 = vmatpush.msra.mxu0 %v1563
    %1646 = vmatpush.msra.mxu0 %v1559
    %1647 = vmatpush.msra.mxu0 %v1555
    %1648 = vmatpush.msra.mxu0 %v1551
    %1649 = vmatpush.msra.mxu0 %v1547
    %1650 = vmatpush.msra.mxu0 %v1543
    %1651 = vmatpush.msra.mxu0 %v1539
    %1652 = vmatpush.msra.mxu0 %v1535
    %1653 = vmatmul.f32.gmra.mxu0 %v1526
    %v1654 = vpop.f32.mrf.mxu0
    %v1655 = vadd.f32 0.0, %v1654
    %1656 = vdwg.mxu0
    %1657 = vmatpush.msra.mxu0 %v1596
    %1658 = vmatpush.msra.mxu0 %v1592
    %1659 = vmatpush.msra.mxu0 %v1588
    %1660 = vmatpush.msra.mxu0 %v1584
    %1661 = vmatpush.msra.mxu0 %v1580
    %1662 = vmatpush.msra.mxu0 %v1576
    %1663 = vmatpush.msra.mxu0 %v1572
    %1664 = vmatpush.msra.mxu0 %v1568
    %1665 = vmatpush.msra.mxu0 %v1564
    %1666 = vmatpush.msra.mxu0 %v1560
    %1667 = vmatpush.msra.mxu0 %v1556
    %1668 = vmatpush.msra.mxu0 %v1552
    %1669 = vmatpush.msra.mxu0 %v1548
    %1670 = vmatpush.msra.mxu0 %v1544
    %1671 = vmatpush.msra.mxu0 %v1540
    %1672 = vmatpush.msra.mxu0 %v1536
    %1673 = vmatmul.f32.gmra.mxu0 %v1526
    %v1674 = vpop.f32.mrf.mxu0
    %v1675 = vadd.f32 0.0, %v1674
    %1676 = vdwg.mxu0
    %v1677 = vadd.f32 %v1529, %v1615
    %v1678 = vadd.f32 %v1530, %v1635
    %v1679 = vadd.f32 %v1531, %v1655
    %v1680 = vadd.f32 %v1532, %v1675
    %v1681 = vxor.u32 %v1677, 2147483648
    %v1682 = vmul.f32 %v1681, 1.442695
    %v1683 = vpow.pop %v1682
    %v1684 = vadd.f32 %v1683, 1.0
    %v1685 = vrcp.pop %v1684
    %v1686 = vmul.f32 %v1684, %v1685
    %v1687 = vsub.f32 1.0, %v1686
    %v1688 = vmul.f32 %v1685, %v1687
    %v1689 = vadd.f32 %v1685, %v1688
    %vm1690 = vweird.f32 %v1684
    %vm1691 = vweird.f32 %v1685
    %vm1692 = vmor %vm1690, %vm1691
    %v1693 = vsel %vm1692, %v1685, %v1689
    %v1694 = vand.u32 2147483647, %v1684
    %vm1695 = vcmp.eq.f32.partialorder %v1694, 8.507059e+37
    %v1696 = vand.u32 %v1684, 2147483648
    %v1697 = vor.u32 1.1754944e-38, %v1696
    %v1698 = vsel %vm1695, %v1697, %v1693
    %v1699 = vmul.f32 1.0, %v1698
    %v1700 = vxor.u32 %v1678, 2147483648
    %v1701 = vmul.f32 %v1700, 1.442695
    %v1702 = vpow.pop %v1701
    %v1703 = vadd.f32 %v1702, 1.0
    %v1704 = vrcp.pop %v1703
    %v1705 = vmul.f32 %v1703, %v1704
    %v1706 = vsub.f32 1.0, %v1705
    %v1707 = vmul.f32 %v1704, %v1706
    %v1708 = vadd.f32 %v1704, %v1707
    %vm1709 = vweird.f32 %v1703
    %vm1710 = vweird.f32 %v1704
    %vm1711 = vmor %vm1709, %vm1710
    %v1712 = vsel %vm1711, %v1704, %v1708
    %v1713 = vand.u32 2147483647, %v1703
    %vm1714 = vcmp.eq.f32.partialorder %v1713, 8.507059e+37
    %v1715 = vand.u32 %v1703, 2147483648
    %v1716 = vor.u32 1.1754944e-38, %v1715
    %v1717 = vsel %vm1714, %v1716, %v1712
    %v1718 = vmul.f32 1.0, %v1717
    %v1719 = vtanh.pop %v1679
    %v1720 = vxor.u32 %v1680, 2147483648
    %v1721 = vmul.f32 %v1720, 1.442695
    %v1722 = vpow.pop %v1721
    %v1723 = vadd.f32 %v1722, 1.0
    %v1724 = vrcp.pop %v1723
    %v1725 = vmul.f32 %v1723, %v1724
    %v1726 = vsub.f32 1.0, %v1725
    %v1727 = vmul.f32 %v1724, %v1726
    %v1728 = vadd.f32 %v1724, %v1727
    %vm1729 = vweird.f32 %v1723
    %vm1730 = vweird.f32 %v1724
    %vm1731 = vmor %vm1729, %vm1730
    %v1732 = vsel %vm1731, %v1724, %v1728
    %v1733 = vand.u32 2147483647, %v1723
    %vm1734 = vcmp.eq.f32.partialorder %v1733, 8.507059e+37
    %v1735 = vand.u32 %v1723, 2147483648
    %v1736 = vor.u32 1.1754944e-38, %v1735
    %v1737 = vsel %vm1734, %v1736, %v1732
    %v1738 = vmul.f32 1.0, %v1737
    %v1739 = vmul.f32 %v1718, %v1527
    %v1740 = vmul.f32 %v1699, %v1719
    %v1741 = vadd.f32 %v1739, %v1740
    %1742 = vst [vmem:[#allocation4] sm:$0xff] %v1741
    %v1743 = vtanh.pop %v1741
    %v1744 = vmul.f32 %v1738, %v1743
    %1745 = vst [vmem:[#allocation3] sm:$0xff] %v1744
    %v1746 = vld [vmem:[#allocation3] sm:$0xff]
    %v1747 = vld [vmem:[#allocation4] sm:$0xff]
    %s1748 = scalar_lea.vmem [#allocation2], 224
    %v1749 = vld [vmem:[%s1748] sm:$0xff]
    %v1750 = vld [vmem:[%s1748 + $0x8] sm:$0xff]
    %v1751 = vld [vmem:[%s1748 + $0x10] sm:$0xff]
    %v1752 = vld [vmem:[%s1748 + $0x18] sm:$0xff]
    %v1753 = vld [vmem:[#allocation6] sm:$0xff]
    %v1754 = vld [vmem:[#allocation6 + $0x8] sm:$0xff]
    %v1755 = vld [vmem:[#allocation6 + $0x10] sm:$0xff]
    %v1756 = vld [vmem:[#allocation6 + $0x18] sm:$0xff]
    %v1757 = vld [vmem:[#allocation6 + $0x20] sm:$0xff]
    %v1758 = vld [vmem:[#allocation6 + $0x28] sm:$0xff]
    %v1759 = vld [vmem:[#allocation6 + $0x30] sm:$0xff]
    %v1760 = vld [vmem:[#allocation6 + $0x38] sm:$0xff]
    %v1761 = vld [vmem:[#allocation6 + $0x40] sm:$0xff]
    %v1762 = vld [vmem:[#allocation6 + $0x48] sm:$0xff]
    %v1763 = vld [vmem:[#allocation6 + $0x50] sm:$0xff]
    %v1764 = vld [vmem:[#allocation6 + $0x58] sm:$0xff]
    %v1765 = vld [vmem:[#allocation6 + $0x60] sm:$0xff]
    %v1766 = vld [vmem:[#allocation6 + $0x68] sm:$0xff]
    %v1767 = vld [vmem:[#allocation6 + $0x70] sm:$0xff]
    %v1768 = vld [vmem:[#allocation6 + $0x78] sm:$0xff]
    %v1769 = vld [vmem:[#allocation6 + $0x80] sm:$0xff]
    %v1770 = vld [vmem:[#allocation6 + $0x88] sm:$0xff]
    %v1771 = vld [vmem:[#allocation6 + $0x90] sm:$0xff]
    %v1772 = vld [vmem:[#allocation6 + $0x98] sm:$0xff]
    %v1773 = vld [vmem:[#allocation6 + $0xa0] sm:$0xff]
    %v1774 = vld [vmem:[#allocation6 + $0xa8] sm:$0xff]
    %v1775 = vld [vmem:[#allocation6 + $0xb0] sm:$0xff]
    %v1776 = vld [vmem:[#allocation6 + $0xb8] sm:$0xff]
    %v1777 = vld [vmem:[#allocation6 + $0xc0] sm:$0xff]
    %v1778 = vld [vmem:[#allocation6 + $0xc8] sm:$0xff]
    %v1779 = vld [vmem:[#allocation6 + $0xd0] sm:$0xff]
    %v1780 = vld [vmem:[#allocation6 + $0xd8] sm:$0xff]
    %v1781 = vld [vmem:[#allocation6 + $0xe0] sm:$0xff]
    %v1782 = vld [vmem:[#allocation6 + $0xe8] sm:$0xff]
    %v1783 = vld [vmem:[#allocation6 + $0xf0] sm:$0xff]
    %v1784 = vld [vmem:[#allocation6 + $0xf8] sm:$0xff]
    %v1785 = vld [vmem:[#allocation6 + $0x100] sm:$0xff]
    %v1786 = vld [vmem:[#allocation6 + $0x108] sm:$0xff]
    %v1787 = vld [vmem:[#allocation6 + $0x110] sm:$0xff]
    %v1788 = vld [vmem:[#allocation6 + $0x118] sm:$0xff]
    %v1789 = vld [vmem:[#allocation6 + $0x120] sm:$0xff]
    %v1790 = vld [vmem:[#allocation6 + $0x128] sm:$0xff]
    %v1791 = vld [vmem:[#allocation6 + $0x130] sm:$0xff]
    %v1792 = vld [vmem:[#allocation6 + $0x138] sm:$0xff]
    %v1793 = vld [vmem:[#allocation6 + $0x140] sm:$0xff]
    %v1794 = vld [vmem:[#allocation6 + $0x148] sm:$0xff]
    %v1795 = vld [vmem:[#allocation6 + $0x150] sm:$0xff]
    %v1796 = vld [vmem:[#allocation6 + $0x158] sm:$0xff]
    %v1797 = vld [vmem:[#allocation6 + $0x160] sm:$0xff]
    %v1798 = vld [vmem:[#allocation6 + $0x168] sm:$0xff]
    %v1799 = vld [vmem:[#allocation6 + $0x170] sm:$0xff]
    %v1800 = vld [vmem:[#allocation6 + $0x178] sm:$0xff]
    %v1801 = vld [vmem:[#allocation6 + $0x180] sm:$0xff]
    %v1802 = vld [vmem:[#allocation6 + $0x188] sm:$0xff]
    %v1803 = vld [vmem:[#allocation6 + $0x190] sm:$0xff]
    %v1804 = vld [vmem:[#allocation6 + $0x198] sm:$0xff]
    %v1805 = vld [vmem:[#allocation6 + $0x1a0] sm:$0xff]
    %v1806 = vld [vmem:[#allocation6 + $0x1a8] sm:$0xff]
    %v1807 = vld [vmem:[#allocation6 + $0x1b0] sm:$0xff]
    %v1808 = vld [vmem:[#allocation6 + $0x1b8] sm:$0xff]
    %v1809 = vld [vmem:[#allocation6 + $0x1c0] sm:$0xff]
    %v1810 = vld [vmem:[#allocation6 + $0x1c8] sm:$0xff]
    %v1811 = vld [vmem:[#allocation6 + $0x1d0] sm:$0xff]
    %v1812 = vld [vmem:[#allocation6 + $0x1d8] sm:$0xff]
    %v1813 = vld [vmem:[#allocation6 + $0x1e0] sm:$0xff]
    %v1814 = vld [vmem:[#allocation6 + $0x1e8] sm:$0xff]
    %v1815 = vld [vmem:[#allocation6 + $0x1f0] sm:$0xff]
    %v1816 = vld [vmem:[#allocation6 + $0x1f8] sm:$0xff]
    %1817 = vmatpush.msra.mxu0 %v1813
    %1818 = vmatpush.msra.mxu0 %v1809
    %1819 = vmatpush.msra.mxu0 %v1805
    %1820 = vmatpush.msra.mxu0 %v1801
    %1821 = vmatpush.msra.mxu0 %v1797
    %1822 = vmatpush.msra.mxu0 %v1793
    %1823 = vmatpush.msra.mxu0 %v1789
    %1824 = vmatpush.msra.mxu0 %v1785
    %1825 = vmatpush.msra.mxu0 %v1781
    %1826 = vmatpush.msra.mxu0 %v1777
    %1827 = vmatpush.msra.mxu0 %v1773
    %1828 = vmatpush.msra.mxu0 %v1769
    %1829 = vmatpush.msra.mxu0 %v1765
    %1830 = vmatpush.msra.mxu0 %v1761
    %1831 = vmatpush.msra.mxu0 %v1757
    %1832 = vmatpush.msra.mxu0 %v1753
    %1833 = vmatmul.f32.gmra.mxu0 %v1746
    %v1834 = vpop.f32.mrf.mxu0
    %v1835 = vadd.f32 0.0, %v1834
    %1836 = vdwg.mxu0
    %1837 = vmatpush.msra.mxu0 %v1814
    %1838 = vmatpush.msra.mxu0 %v1810
    %1839 = vmatpush.msra.mxu0 %v1806
    %1840 = vmatpush.msra.mxu0 %v1802
    %1841 = vmatpush.msra.mxu0 %v1798
    %1842 = vmatpush.msra.mxu0 %v1794
    %1843 = vmatpush.msra.mxu0 %v1790
    %1844 = vmatpush.msra.mxu0 %v1786
    %1845 = vmatpush.msra.mxu0 %v1782
    %1846 = vmatpush.msra.mxu0 %v1778
    %1847 = vmatpush.msra.mxu0 %v1774
    %1848 = vmatpush.msra.mxu0 %v1770
    %1849 = vmatpush.msra.mxu0 %v1766
    %1850 = vmatpush.msra.mxu0 %v1762
    %1851 = vmatpush.msra.mxu0 %v1758
    %1852 = vmatpush.msra.mxu0 %v1754
    %1853 = vmatmul.f32.gmra.mxu0 %v1746
    %v1854 = vpop.f32.mrf.mxu0
    %v1855 = vadd.f32 0.0, %v1854
    %1856 = vdwg.mxu0
    %1857 = vmatpush.msra.mxu0 %v1815
    %1858 = vmatpush.msra.mxu0 %v1811
    %1859 = vmatpush.msra.mxu0 %v1807
    %1860 = vmatpush.msra.mxu0 %v1803
    %1861 = vmatpush.msra.mxu0 %v1799
    %1862 = vmatpush.msra.mxu0 %v1795
    %1863 = vmatpush.msra.mxu0 %v1791
    %1864 = vmatpush.msra.mxu0 %v1787
    %1865 = vmatpush.msra.mxu0 %v1783
    %1866 = vmatpush.msra.mxu0 %v1779
    %1867 = vmatpush.msra.mxu0 %v1775
    %1868 = vmatpush.msra.mxu0 %v1771
    %1869 = vmatpush.msra.mxu0 %v1767
    %1870 = vmatpush.msra.mxu0 %v1763
    %1871 = vmatpush.msra.mxu0 %v1759
    %1872 = vmatpush.msra.mxu0 %v1755
    %1873 = vmatmul.f32.gmra.mxu0 %v1746
    %v1874 = vpop.f32.mrf.mxu0
    %v1875 = vadd.f32 0.0, %v1874
    %1876 = vdwg.mxu0
    %1877 = vmatpush.msra.mxu0 %v1816
    %1878 = vmatpush.msra.mxu0 %v1812
    %1879 = vmatpush.msra.mxu0 %v1808
    %1880 = vmatpush.msra.mxu0 %v1804
    %1881 = vmatpush.msra.mxu0 %v1800
    %1882 = vmatpush.msra.mxu0 %v1796
    %1883 = vmatpush.msra.mxu0 %v1792
    %1884 = vmatpush.msra.mxu0 %v1788
    %1885 = vmatpush.msra.mxu0 %v1784
    %1886 = vmatpush.msra.mxu0 %v1780
    %1887 = vmatpush.msra.mxu0 %v1776
    %1888 = vmatpush.msra.mxu0 %v1772
    %1889 = vmatpush.msra.mxu0 %v1768
    %1890 = vmatpush.msra.mxu0 %v1764
    %1891 = vmatpush.msra.mxu0 %v1760
    %1892 = vmatpush.msra.mxu0 %v1756
    %1893 = vmatmul.f32.gmra.mxu0 %v1746
    %v1894 = vpop.f32.mrf.mxu0
    %v1895 = vadd.f32 0.0, %v1894
    %1896 = vdwg.mxu0
    %v1897 = vadd.f32 %v1749, %v1835
    %v1898 = vadd.f32 %v1750, %v1855
    %v1899 = vadd.f32 %v1751, %v1875
    %v1900 = vadd.f32 %v1752, %v1895
    %v1901 = vxor.u32 %v1897, 2147483648
    %v1902 = vmul.f32 %v1901, 1.442695
    %v1903 = vpow.pop %v1902
    %v1904 = vadd.f32 %v1903, 1.0
    %v1905 = vrcp.pop %v1904
    %v1906 = vmul.f32 %v1904, %v1905
    %v1907 = vsub.f32 1.0, %v1906
    %v1908 = vmul.f32 %v1905, %v1907
    %v1909 = vadd.f32 %v1905, %v1908
    %vm1910 = vweird.f32 %v1904
    %vm1911 = vweird.f32 %v1905
    %vm1912 = vmor %vm1910, %vm1911
    %v1913 = vsel %vm1912, %v1905, %v1909
    %v1914 = vand.u32 2147483647, %v1904
    %vm1915 = vcmp.eq.f32.partialorder %v1914, 8.507059e+37
    %v1916 = vand.u32 %v1904, 2147483648
    %v1917 = vor.u32 1.1754944e-38, %v1916
    %v1918 = vsel %vm1915, %v1917, %v1913
    %v1919 = vmul.f32 1.0, %v1918
    %v1920 = vxor.u32 %v1898, 2147483648
    %v1921 = vmul.f32 %v1920, 1.442695
    %v1922 = vpow.pop %v1921
    %v1923 = vadd.f32 %v1922, 1.0
    %v1924 = vrcp.pop %v1923
    %v1925 = vmul.f32 %v1923, %v1924
    %v1926 = vsub.f32 1.0, %v1925
    %v1927 = vmul.f32 %v1924, %v1926
    %v1928 = vadd.f32 %v1924, %v1927
    %vm1929 = vweird.f32 %v1923
    %vm1930 = vweird.f32 %v1924
    %vm1931 = vmor %vm1929, %vm1930
    %v1932 = vsel %vm1931, %v1924, %v1928
    %v1933 = vand.u32 2147483647, %v1923
    %vm1934 = vcmp.eq.f32.partialorder %v1933, 8.507059e+37
    %v1935 = vand.u32 %v1923, 2147483648
    %v1936 = vor.u32 1.1754944e-38, %v1935
    %v1937 = vsel %vm1934, %v1936, %v1932
    %v1938 = vmul.f32 1.0, %v1937
    %v1939 = vtanh.pop %v1899
    %v1940 = vxor.u32 %v1900, 2147483648
    %v1941 = vmul.f32 %v1940, 1.442695
    %v1942 = vpow.pop %v1941
    %v1943 = vadd.f32 %v1942, 1.0
    %v1944 = vrcp.pop %v1943
    %v1945 = vmul.f32 %v1943, %v1944
    %v1946 = vsub.f32 1.0, %v1945
    %v1947 = vmul.f32 %v1944, %v1946
    %v1948 = vadd.f32 %v1944, %v1947
    %vm1949 = vweird.f32 %v1943
    %vm1950 = vweird.f32 %v1944
    %vm1951 = vmor %vm1949, %vm1950
    %v1952 = vsel %vm1951, %v1944, %v1948
    %v1953 = vand.u32 2147483647, %v1943
    %vm1954 = vcmp.eq.f32.partialorder %v1953, 8.507059e+37
    %v1955 = vand.u32 %v1943, 2147483648
    %v1956 = vor.u32 1.1754944e-38, %v1955
    %v1957 = vsel %vm1954, %v1956, %v1952
    %v1958 = vmul.f32 1.0, %v1957
    %v1959 = vmul.f32 %v1938, %v1747
    %v1960 = vmul.f32 %v1919, %v1939
    %v1961 = vadd.f32 %v1959, %v1960
    %1962 = vst [vmem:[#allocation4] sm:$0xff] %v1961
    %v1963 = vtanh.pop %v1961
    %v1964 = vmul.f32 %v1958, %v1963
    %1965 = vst [vmem:[#allocation3] sm:$0xff] %v1964
    %v1966 = vld [vmem:[#allocation3] sm:$0xff]
    %v1967 = vld [vmem:[%s4] sm:$0xff]
    %v1968 = vld [vmem:[%s4 + $0x8] sm:$0xff]
    %v1969 = vld [vmem:[%s4 + $0x10] sm:$0xff]
    %v1970 = vld [vmem:[%s4 + $0x18] sm:$0xff]
    %v1971 = vld [vmem:[%s4 + $0x20] sm:$0xff]
    %v1972 = vld [vmem:[%s4 + $0x28] sm:$0xff]
    %v1973 = vld [vmem:[%s4 + $0x30] sm:$0xff]
    %v1974 = vld [vmem:[%s4 + $0x38] sm:$0xff]
    %v1975 = vld [vmem:[%s4 + $0x40] sm:$0xff]
    %v1976 = vld [vmem:[%s4 + $0x48] sm:$0xff]
    %v1977 = vld [vmem:[%s4 + $0x50] sm:$0xff]
    %v1978 = vld [vmem:[%s4 + $0x58] sm:$0xff]
    %v1979 = vld [vmem:[%s4 + $0x60] sm:$0xff]
    %v1980 = vld [vmem:[%s4 + $0x68] sm:$0xff]
    %v1981 = vld [vmem:[%s4 + $0x70] sm:$0xff]
    %v1982 = vld [vmem:[%s4 + $0x78] sm:$0xff]
    %v1983 = vld [vmem:[#allocation5] sm:$0x1]
    %v1985 = vperm.slane %v1983, 0
    %1987 = vmatpush.msra.mxu0 %v1982
    %1988 = vmatpush.msra.mxu0 %v1981
    %1989 = vmatpush.msra.mxu0 %v1980
    %1990 = vmatpush.msra.mxu0 %v1979
    %1991 = vmatpush.msra.mxu0 %v1978
    %1992 = vmatpush.msra.mxu0 %v1977
    %1993 = vmatpush.msra.mxu0 %v1976
    %1994 = vmatpush.msra.mxu0 %v1975
    %1995 = vmatpush.msra.mxu0 %v1974
    %1996 = vmatpush.msra.mxu0 %v1973
    %1997 = vmatpush.msra.mxu0 %v1972
    %1998 = vmatpush.msra.mxu0 %v1971
    %1999 = vmatpush.msra.mxu0 %v1970
    %2000 = vmatpush.msra.mxu0 %v1969
    %2001 = vmatpush.msra.mxu0 %v1968
    %2002 = vmatpush.msra.mxu0 %v1967
    %2003 = vmatmul.f32.gmra.mxu0 %v1966
    %v2004 = vpop.f32.mrf.mxu0
    %v2005 = vadd.f32 %v1985, %v2004
    %2006 = vdwg.mxu0
    %vm2007 = vcmask 7168
    %2008 = vst.msk [vmem:[%s6] sm:$0xff] %vm2007, %v2005
    // Predicated region
    $region30: #{tpu_custom_call.1} parent=1 // pred_check
      _
    $region31: #{tpu_custom_call.1} parent=1 // pred_check_branch
      %2010 = sbr.rel (0) target = $region33
    $region32: #{tpu_custom_call.1} parent=1 // pred_region
      _
    $region33: #{tpu_custom_call.1} parent=1 // pred_fallthru
      _
    // Predicated region
    $region34: #{tpu_custom_call.1} parent=1 // pred_check
      _
    $region35: #{tpu_custom_call.1} parent=1 // pred_check_branch
      %2012 = sbr.rel (0) target = $region37
    $region36: #{tpu_custom_call.1} parent=1 // pred_region
      _
    $region37: #{tpu_custom_call.1} parent=1 // pred_fallthru
      _
    %2013 = vsyncpa [#allocation7], 1

</llo_original>
